<compile_context>
chip_gen: v7x
topology: tpu7x:2x2x1
jax: 0.10.0
libtpu: 0.0.40
codegen_flags: <defaults>
</compile_context>

<pallas_src>
import jax
import jax.numpy as jnp
from jax.experimental import pallas as pl
from jax.experimental.pallas import tpu as pltpu

POSE_DIM = 6                             # opt.model.net_motion.pose_dim
EYE_DIM = 6                              # opt.model.net_motion.eye_dim
FEAT = 512                               # backbone feature width (nOut)
MOUTH_DIM = FEAT - POSE_DIM - EYE_DIM    # 500
_MM_DTYPE = jnp.bfloat16                 # MXU operand dtype (f32 accumulate)

_VMEM_BUDGET = 32 << 20                  # target working set (fits all gens)
_VMEM_LIMIT = 48 << 20                   # scoped limit passed to Mosaic


def _round_up(n, m):
    return (n + m - 1) // m * m


def _vmem_bytes(bm, k1):
    """Rough double-buffered VMEM footprint of one grid step."""
    in_b = 2 * bm * k1 * 2               # bf16 input block, 2 buffers
    w1_b = 2 * k1 * FEAT * 2             # bf16 folded backbone weight
    w2_b = 2 * FEAT * FEAT * 2           # bf16 mouth weight (lane-padded)
    out_b = 2 * 2 * bm * FEAT * 4        # two f32 output blocks, 2 buffers
    bias_b = 2 * 2 * FEAT * 4
    return in_b + w1_b + w2_b + out_b + bias_b


# ---------------------------------------------------------------------------
# Fused kernel (pool already folded into w1):
#   Linear(C*F*T, 512)                              (backbone stand-in, = `out`)
#   -> ReLU -> Linear(512, 500 lane-padded to 512)  (mouth_embed)
def _fused_kernel(x_ref, w1_ref, b1_ref, w2_ref, b2_ref, feat_ref, mouth_ref):
    feat = jnp.dot(x_ref[...], w1_ref[...],
                   preferred_element_type=jnp.float32) + b1_ref[...]
    feat_ref[...] = feat                       # `out` (no activation, like ResNetSE fc)
    h = jnp.maximum(feat, 0.0)                 # mouth_embed ReLU
    mouth_ref[...] = jnp.dot(h.astype(_MM_DTYPE), w2_ref[...],
                             preferred_element_type=jnp.float32) + b2_ref[...]


# ---------------------------------------------------------------------------
def res_se_audio_encoder_forward(x, params):
    """Returns (out, mouth_embed) matching the PyTorch forward()."""
    # 5-D (bz, clip_len, c, f, t) -> (bz*clip_len, c, f, t), as in the module.
    if x.ndim == 5:
        bz, clip_len, c, f, t = x.shape
        x = x.reshape(bz * clip_len, c, f, t)
    n, c, f, t = x.shape
    k1 = c * f * t                                   # matmul-1 K dim

    # Contiguous flatten (free reshape) + bf16 cast; time pool lives in w1p.
    x2 = x.reshape(n, k1)
    if x2.dtype != _MM_DTYPE:
        x2 = x2.astype(_MM_DTYPE)

    # Pad batch to >=8 sublanes; pick a large batch block (256/512) so per-step
    # pipeline overhead is amortized, keeping >=2 grid steps for big batches
    # (v7x megacore) and respecting the VMEM budget.
    n_pad = _round_up(max(n, 8), 8)
    bm = min(n_pad, 512 if n_pad >= 1024 else 256)
    while bm > 8 and _vmem_bytes(bm, k1) > _VMEM_BUDGET:
        bm = _round_up(bm // 2, 8)
    # TODO(synk): for very long clips (k1 so large the folded weight alone
    # breaks the budget) add a K-chunk grid axis marked "arbitrary" with an
    # in-kernel f32 accumulator instead of shrinking bm further.
    n_pad = _round_up(n_pad, bm)
    if n_pad != n:
        x2 = jnp.pad(x2, ((0, n_pad - n), (0, 0)))

    grid = (n_pad // bm,)
    feat, mouth = pl.pallas_call(
        _fused_kernel,
        out_shape=(jax.ShapeDtypeStruct((n_pad, FEAT), jnp.float32),
                   jax.ShapeDtypeStruct((n_pad, FEAT), jnp.float32)),
        grid=grid,
        in_specs=[
            pl.BlockSpec((bm, k1), lambda i: (i, 0)),     # input tile (bf16)
            pl.BlockSpec((k1, FEAT), lambda i: (0, 0)),   # pool-folded W1 (bf16)
            pl.BlockSpec((1, FEAT), lambda i: (0, 0)),    # backbone b (f32)
            pl.BlockSpec((FEAT, FEAT), lambda i: (0, 0)),  # mouth W (lane-padded, bf16)
            pl.BlockSpec((1, FEAT), lambda i: (0, 0)),    # mouth b (lane-padded, f32)
        ],
        out_specs=(pl.BlockSpec((bm, FEAT), lambda i: (i, 0)),
                   pl.BlockSpec((bm, FEAT), lambda i: (i, 0))),
        compiler_params=pltpu.CompilerParams(
            dimension_semantics=("parallel",),
            vmem_limit_bytes=_VMEM_LIMIT),
    )(x2, params["w1p"], params["b1"], params["w2p"], params["b2p"])

    out = feat[:n]                       # (N, 512)
    mouth_embed = mouth[:n, :MOUTH_DIM]  # (N, 500) — strip lane padding
    return out, mouth_embed


# ---------------------------------------------------------------------------
# Deterministic synthetic parameters (shapes match the nn.Module); all
# pool-folding / padding / dtype casting is done once here, not per call.
def init_params(key, c, f, t):
    cf = c * f
    k1, k2, k3, k4 = jax.random.split(key, 4)
    w1 = jax.random.normal(k1, (cf, FEAT), jnp.float32) * 0.02
    b1 = jax.random.normal(k2, (1, FEAT), jnp.float32) * 0.01
    w2 = jax.random.normal(k3, (FEAT, MOUTH_DIM), jnp.float32) * 0.02
    b2 = jax.random.normal(k4, (1, MOUTH_DIM), jnp.float32) * 0.01

    # Fold the time-average pool into W1: row (c*F + f) of w1 is repeated T
    # consecutive times (matching the contiguous (C,F,T) flatten order) and
    # scaled by 1/T, so  x2d @ w1p == mean_t(x) @ w1  exactly.
    w1p = jnp.repeat(w1, t, axis=0) / float(t)           # (C*F*T, 512)

    # Lane-pad the mouth_embed projection to 512 output columns so the kernel's
    # store is a full (BM, 512) unmasked slab (padded cols are zero).
    w2p = jnp.zeros((FEAT, FEAT), jnp.float32).at[:, :MOUTH_DIM].set(w2)
    b2p = jnp.zeros((1, FEAT), jnp.float32).at[:, :MOUTH_DIM].set(b2)
    return {
        "w1p": w1p.astype(_MM_DTYPE),
        "b1": b1,
        "w2p": w2p.astype(_MM_DTYPE),
        "b2p": b2p,
    }


if __name__ == "__main__":
    key = jax.random.PRNGKey(0)
    k_x, k_p = jax.random.split(key)

    # Small 5-D mel-spectrogram clip batch: (bz, clip_len, c, f, t).
    bz, clip_len, c, f, t = 2, 2, 1, 32, 16
    x = jax.random.normal(k_x, (bz, clip_len, c, f, t), jnp.float32)
    params = init_params(k_p, c, f, t)

    out, mouth_embed = jax.block_until_ready(
        jax.jit(res_se_audio_encoder_forward)(x, params))

    assert out.shape == (bz * clip_len, FEAT)
    assert mouth_embed.shape == (bz * clip_len, MOUTH_DIM)
    assert bool(jnp.all(jnp.isfinite(out)))
    assert bool(jnp.all(jnp.isfinite(mouth_embed)))
    print("KERNEL_OK")
</pallas_src>

<mosaic_0001>
module attributes {stable_mosaic.version = 11 : i64} {
  func.func @_fused_kernel(%arg0: i32, %arg1: memref<8x512xbf16, #tpu.memory_space<vmem>>, %arg2: memref<512x512xbf16, #tpu.memory_space<vmem>>, %arg3: memref<1x512xf32, #tpu.memory_space<vmem>>, %arg4: memref<512x512xbf16, #tpu.memory_space<vmem>>, %arg5: memref<1x512xf32, #tpu.memory_space<vmem>>, %arg6: memref<8x512xf32, #tpu.memory_space<vmem>>, %arg7: memref<8x512xf32, #tpu.memory_space<vmem>>) attributes {dimension_semantics = [#tpu.dimension_semantics<parallel>], iteration_bounds = array<i64: 1>, scalar_prefetch = 0 : i64, scratch_operands = 0 : i64, tpu.core_type = #tpu.core_type<tc>, window_params = [{transform_indices = @transform_0, window_bounds = array<i64: 8, 512>}, {pipeline_mode = #tpu.pipeline_mode<synchronous>, transform_indices = @transform_1, window_bounds = array<i64: 512, 512>}, {pipeline_mode = #tpu.pipeline_mode<synchronous>, transform_indices = @transform_2, window_bounds = array<i64: 1, 512>}, {pipeline_mode = #tpu.pipeline_mode<synchronous>, transform_indices = @transform_3, window_bounds = array<i64: 512, 512>}, {pipeline_mode = #tpu.pipeline_mode<synchronous>, transform_indices = @transform_4, window_bounds = array<i64: 1, 512>}, {transform_indices = @transform_5, window_bounds = array<i64: 8, 512>}, {transform_indices = @transform_6, window_bounds = array<i64: 8, 512>}]} {
    %c0 = arith.constant 0 : index
    %c0_0 = arith.constant 0 : index
    %0 = vector.load %arg1[%c0, %c0_0] : memref<8x512xbf16, #tpu.memory_space<vmem>>, vector<8x512xbf16>
    %c0_1 = arith.constant 0 : index
    %c0_2 = arith.constant 0 : index
    %1 = vector.load %arg2[%c0_1, %c0_2] : memref<512x512xbf16, #tpu.memory_space<vmem>>, vector<512x512xbf16>
    %cst = arith.constant dense<0.000000e+00> : vector<8x512xf32>
    %2 = tpu.matmul %0, %1, %cst {dimension_numbers = #tpu.dot_dimension_numbers<[1], [0], [0], [1], [0, 0, 1, 1], [], []>} : vector<8x512xbf16>, vector<512x512xbf16>, vector<8x512xf32> -> vector<8x512xf32>
    %c0_3 = arith.constant 0 : index
    %c0_4 = arith.constant 0 : index
    %3 = vector.load %arg3[%c0_3, %c0_4] : memref<1x512xf32, #tpu.memory_space<vmem>>, vector<1x512xf32>
    %4 = vector.broadcast %3 : vector<1x512xf32> to vector<8x512xf32>
    %5 = arith.addf %2, %4 : vector<8x512xf32>
    %c0_5 = arith.constant 0 : index
    %c0_6 = arith.constant 0 : index
    %6 = vector.load %arg6[%c0_5, %c0_6] : memref<8x512xf32, #tpu.memory_space<vmem>>, vector<8x512xf32>
    tpu.vector_store %arg6[%c0_5, %c0_6], %5 {strides = array<i32>} : memref<8x512xf32, #tpu.memory_space<vmem>>, vector<8x512xf32>,
    %cst_7 = arith.constant 0.000000e+00 : f32
    %7 = vector.broadcast %cst_7 : f32 to vector<8x512xf32>
    %8 = arith.maximumf %5, %7 : vector<8x512xf32>
    %9 = arith.truncf %8 : vector<8x512xf32> to vector<8x512xbf16>
    %c0_8 = arith.constant 0 : index
    %c0_9 = arith.constant 0 : index
    %10 = vector.load %arg4[%c0_8, %c0_9] : memref<512x512xbf16, #tpu.memory_space<vmem>>, vector<512x512xbf16>
    %cst_10 = arith.constant dense<0.000000e+00> : vector<8x512xf32>
    %11 = tpu.matmul %9, %10, %cst_10 {dimension_numbers = #tpu.dot_dimension_numbers<[1], [0], [0], [1], [0, 0, 1, 1], [], []>} : vector<8x512xbf16>, vector<512x512xbf16>, vector<8x512xf32> -> vector<8x512xf32>
    %c0_11 = arith.constant 0 : index
    %c0_12 = arith.constant 0 : index
    %12 = vector.load %arg5[%c0_11, %c0_12] : memref<1x512xf32, #tpu.memory_space<vmem>>, vector<1x512xf32>
    %13 = vector.broadcast %12 : vector<1x512xf32> to vector<8x512xf32>
    %14 = arith.addf %11, %13 : vector<8x512xf32>
    %c0_13 = arith.constant 0 : index
    %c0_14 = arith.constant 0 : index
    %15 = vector.load %arg7[%c0_13, %c0_14] : memref<8x512xf32, #tpu.memory_space<vmem>>, vector<8x512xf32>
    tpu.vector_store %arg7[%c0_13, %c0_14], %14 {strides = array<i32>} : memref<8x512xf32, #tpu.memory_space<vmem>>, vector<8x512xf32>,
    return
  }
  func.func @transform_0(%arg0: i32) -> (i32, i32) {
    %c0_i32 = arith.constant 0 : i32
    %c0_i32_0 = arith.constant 0 : i32
    return %arg0, %c0_i32 : i32, i32
  }
  func.func @transform_1(%arg0: i32) -> (i32, i32) {
    %c0_i32 = arith.constant 0 : i32
    %c0_i32_0 = arith.constant 0 : i32
    %c0_i32_1 = arith.constant 0 : i32
    return %c0_i32, %c0_i32_0 : i32, i32
  }
  func.func @transform_2(%arg0: i32) -> (i32, i32) {
    %c0_i32 = arith.constant 0 : i32
    %c0_i32_0 = arith.constant 0 : i32
    %c0_i32_1 = arith.constant 0 : i32
    return %c0_i32, %c0_i32_0 : i32, i32
  }
  func.func @transform_3(%arg0: i32) -> (i32, i32) {
    %c0_i32 = arith.constant 0 : i32
    %c0_i32_0 = arith.constant 0 : i32
    %c0_i32_1 = arith.constant 0 : i32
    return %c0_i32, %c0_i32_0 : i32, i32
  }
  func.func @transform_4(%arg0: i32) -> (i32, i32) {
    %c0_i32 = arith.constant 0 : i32
    %c0_i32_0 = arith.constant 0 : i32
    %c0_i32_1 = arith.constant 0 : i32
    return %c0_i32, %c0_i32_0 : i32, i32
  }
  func.func @transform_5(%arg0: i32) -> (i32, i32) {
    %c0_i32 = arith.constant 0 : i32
    %c0_i32_0 = arith.constant 0 : i32
    return %arg0, %c0_i32 : i32, i32
  }
  func.func @transform_6(%arg0: i32) -> (i32, i32) {
    %c0_i32 = arith.constant 0 : i32
    %c0_i32_0 = arith.constant 0 : i32
    return %arg0, %c0_i32 : i32, i32
  }
}

</mosaic_0001>

<llo_original>
// kernel: res_se_audio_encoder_forward.1
$region0: #{res_se_audio_encoder_forward.1}
  #allocation0 [shape = 'u32[]', space=smem, size = 0x4, offset = 0x4, fixed_abs, tag = 'smem constant byte address 0x4 - core index']
  #allocation1 [shape = 'u32[144,128]{1,0:T(1,128)}', space=vmem, size = 0x12000, scoped, tag = 'internal scratch']
  %s0 = inlined_call_operand.vmem [shape: bf16[8,512], index: 0, kind: input, shape index: {}]
  %s1 = inlined_call_operand.hbm [shape: bf16[512,512], index: 1, kind: input, shape index: {}]
  %s2 = inlined_call_operand.vmem [shape: f32[1,512], index: 2, kind: input, shape index: {}]
  %s3 = inlined_call_operand.hbm [shape: bf16[512,512], index: 3, kind: input, shape index: {}]
  %s4 = inlined_call_operand.vmem [shape: f32[1,512], index: 4, kind: input, shape index: {}]
  %s5 = inlined_call_operand.vmem [shape: f32[8,512], index: 5, kind: output, shape index: {0}]
  %s6 = inlined_call_operand.vmem [shape: f32[8,512], index: 6, kind: output, shape index: {1}]
  %7 = xla_tuple %s5, %s6
  %s8 = sld [smem:[#allocation0]]
  $region46: #{res_se_audio_encoder_forward.1} parent=0
    _
  %s10 = ssub.s32 1, %s8
  %s11 = scalar_select 0, %s10, %s8
  $region1: #{res_se_audio_encoder_forward.1} parent=0
    #allocation2 [shape = 'u8[524288]{0}', space=vmem, size = 0x80000, scoped, tag = 'input window, operand 1, single buffered']
    #allocation3 [shape = 's32[1]{0}', space=sflag, size = 0x4, scoped, tag = 'scoped memory for res_se_audio_encoder_forward.1']
    #allocation4 [shape = 'u8[524288]{0}', space=vmem, size = 0x80000, scoped, tag = 'input window, operand 3, single buffered']
    #allocation5 [shape = 's32[1]{0}', space=sflag, size = 0x4, scoped, tag = 'scoped memory for res_se_audio_encoder_forward.1']
    %12 = vsyncpa [#allocation3], 0
    %13 = vsyncpa [#allocation5], 0
    // Predicated region
    $region2: #{res_se_audio_encoder_forward.1} parent=1 // pred_check
      _
    $region3: #{res_se_audio_encoder_forward.1} parent=1 // pred_check_branch
      %15 = sbr.rel (0) target = $region5
    $region4: #{res_se_audio_encoder_forward.1} parent=1 // pred_region
      _
    $region5: #{res_se_audio_encoder_forward.1} parent=1 // pred_fallthru
      _
    // Predicated region
    $region6: #{res_se_audio_encoder_forward.1} parent=1 // pred_check
      _
    $region7: #{res_se_audio_encoder_forward.1} parent=1 // pred_check_branch
      %17 = sbr.rel (0) target = $region9
    $region8: #{res_se_audio_encoder_forward.1} parent=1 // pred_region
      %s19 = ssub.s32 16384, 16384
      %20 = vsyncadd [#allocation3], %s19
      %s21 = sshll.u32 [#allocation2], 4
      %s22 = int_to_ptr.vmem [resolvable:$true] %s21
      %27 = dma.hbm_to_vmem [thread:$0]  %s1, 16384, %s22, [#allocation3], 256, 256, 16
    $region9: #{res_se_audio_encoder_forward.1} parent=1 // pred_fallthru
      _
    // Predicated region
    $region10: #{res_se_audio_encoder_forward.1} parent=1 // pred_check
      _
    $region11: #{res_se_audio_encoder_forward.1} parent=1 // pred_check_branch
      %29 = sbr.rel (0) target = $region13
    $region12: #{res_se_audio_encoder_forward.1} parent=1 // pred_region
      _
    $region13: #{res_se_audio_encoder_forward.1} parent=1 // pred_fallthru
      _
    // Predicated region
    $region14: #{res_se_audio_encoder_forward.1} parent=1 // pred_check
      _
    $region15: #{res_se_audio_encoder_forward.1} parent=1 // pred_check_branch
      %31 = sbr.rel (0) target = $region17
    $region16: #{res_se_audio_encoder_forward.1} parent=1 // pred_region
      %s33 = ssub.s32 16384, 16384
      %34 = vsyncadd [#allocation5], %s33
      %s35 = sshll.u32 [#allocation4], 4
      %s36 = int_to_ptr.vmem [resolvable:$true] %s35
      %41 = dma.hbm_to_vmem [thread:$0]  %s3, 16384, %s36, [#allocation5], 256, 256, 16
    $region17: #{res_se_audio_encoder_forward.1} parent=1 // pred_fallthru
      _
    // Predicated region
    $region18: #{res_se_audio_encoder_forward.1} parent=1 // pred_check
      _
    $region19: #{res_se_audio_encoder_forward.1} parent=1 // pred_check_branch
      %43 = sbr.rel (0) target = $region21
    $region20: #{res_se_audio_encoder_forward.1} parent=1 // pred_region
      _
    $region21: #{res_se_audio_encoder_forward.1} parent=1 // pred_fallthru
      _
    // Predicated region
    $region22: #{res_se_audio_encoder_forward.1} parent=1 // pred_check
      _
    $region23: #{res_se_audio_encoder_forward.1} parent=1 // pred_check_branch
      %45 = sbr.rel (0) target = $region25
    $region24: #{res_se_audio_encoder_forward.1} parent=1 // pred_region
      %46 = dma.done [#allocation3], 16384
    $region25: #{res_se_audio_encoder_forward.1} parent=1 // pred_fallthru
      _
    // Predicated region
    $region26: #{res_se_audio_encoder_forward.1} parent=1 // pred_check
      _
    $region27: #{res_se_audio_encoder_forward.1} parent=1 // pred_check_branch
      %48 = sbr.rel (0) target = $region29
    $region28: #{res_se_audio_encoder_forward.1} parent=1 // pred_region
      %49 = dma.done [#allocation5], 16384
    $region29: #{res_se_audio_encoder_forward.1} parent=1 // pred_fallthru
      _
    %v50 = vld [vmem:[%s0] sm:$0xff]
    %v51 = vld [vmem:[%s0 + $0x8] sm:$0xff]
    %v52 = vld [vmem:[#allocation2] sm:$0xff]
    %v53 = vld [vmem:[#allocation2 + $0x8] sm:$0xff]
    %v54 = vld [vmem:[#allocation2 + $0x10] sm:$0xff]
    %v55 = vld [vmem:[#allocation2 + $0x18] sm:$0xff]
    %v56 = vld [vmem:[#allocation2 + $0x20] sm:$0xff]
    %v57 = vld [vmem:[#allocation2 + $0x28] sm:$0xff]
    %v58 = vld [vmem:[#allocation2 + $0x30] sm:$0xff]
    %v59 = vld [vmem:[#allocation2 + $0x38] sm:$0xff]
    %v60 = vld [vmem:[#allocation2 + $0x40] sm:$0xff]
    %v61 = vld [vmem:[#allocation2 + $0x48] sm:$0xff]
    %v62 = vld [vmem:[#allocation2 + $0x50] sm:$0xff]
    %v63 = vld [vmem:[#allocation2 + $0x58] sm:$0xff]
    %v64 = vld [vmem:[#allocation2 + $0x60] sm:$0xff]
    %v65 = vld [vmem:[#allocation2 + $0x68] sm:$0xff]
    %v66 = vld [vmem:[#allocation2 + $0x70] sm:$0xff]
    %v67 = vld [vmem:[#allocation2 + $0x78] sm:$0xff]
    %v68 = vld [vmem:[#allocation2 + $0x80] sm:$0xff]
    %v69 = vld [vmem:[#allocation2 + $0x88] sm:$0xff]
    %v70 = vld [vmem:[#allocation2 + $0x90] sm:$0xff]
    %v71 = vld [vmem:[#allocation2 + $0x98] sm:$0xff]
    %v72 = vld [vmem:[#allocation2 + $0xa0] sm:$0xff]
    %v73 = vld [vmem:[#allocation2 + $0xa8] sm:$0xff]
    %v74 = vld [vmem:[#allocation2 + $0xb0] sm:$0xff]
    %v75 = vld [vmem:[#allocation2 + $0xb8] sm:$0xff]
    %v76 = vld [vmem:[#allocation2 + $0xc0] sm:$0xff]
    %v77 = vld [vmem:[#allocation2 + $0xc8] sm:$0xff]
    %v78 = vld [vmem:[#allocation2 + $0xd0] sm:$0xff]
    %v79 = vld [vmem:[#allocation2 + $0xd8] sm:$0xff]
    %v80 = vld [vmem:[#allocation2 + $0xe0] sm:$0xff]
    %v81 = vld [vmem:[#allocation2 + $0xe8] sm:$0xff]
    %v82 = vld [vmem:[#allocation2 + $0xf0] sm:$0xff]
    %v83 = vld [vmem:[#allocation2 + $0xf8] sm:$0xff]
    %v84 = vld [vmem:[#allocation2 + $0x100] sm:$0xff]
    %v85 = vld [vmem:[#allocation2 + $0x108] sm:$0xff]
    %v86 = vld [vmem:[#allocation2 + $0x110] sm:$0xff]
    %v87 = vld [vmem:[#allocation2 + $0x118] sm:$0xff]
    %v88 = vld [vmem:[#allocation2 + $0x120] sm:$0xff]
    %v89 = vld [vmem:[#allocation2 + $0x128] sm:$0xff]
    %v90 = vld [vmem:[#allocation2 + $0x130] sm:$0xff]
    %v91 = vld [vmem:[#allocation2 + $0x138] sm:$0xff]
    %v92 = vld [vmem:[#allocation2 + $0x140] sm:$0xff]
    %v93 = vld [vmem:[#allocation2 + $0x148] sm:$0xff]
    %v94 = vld [vmem:[#allocation2 + $0x150] sm:$0xff]
    %v95 = vld [vmem:[#allocation2 + $0x158] sm:$0xff]
    %v96 = vld [vmem:[#allocation2 + $0x160] sm:$0xff]
    %v97 = vld [vmem:[#allocation2 + $0x168] sm:$0xff]
    %v98 = vld [vmem:[#allocation2 + $0x170] sm:$0xff]
    %v99 = vld [vmem:[#allocation2 + $0x178] sm:$0xff]
    %v100 = vld [vmem:[#allocation2 + $0x180] sm:$0xff]
    %v101 = vld [vmem:[#allocation2 + $0x188] sm:$0xff]
    %v102 = vld [vmem:[#allocation2 + $0x190] sm:$0xff]
    %v103 = vld [vmem:[#allocation2 + $0x198] sm:$0xff]
    %v104 = vld [vmem:[#allocation2 + $0x1a0] sm:$0xff]
    %v105 = vld [vmem:[#allocation2 + $0x1a8] sm:$0xff]
    %v106 = vld [vmem:[#allocation2 + $0x1b0] sm:$0xff]
    %v107 = vld [vmem:[#allocation2 + $0x1b8] sm:$0xff]
    %v108 = vld [vmem:[#allocation2 + $0x1c0] sm:$0xff]
    %v109 = vld [vmem:[#allocation2 + $0x1c8] sm:$0xff]
    %v110 = vld [vmem:[#allocation2 + $0x1d0] sm:$0xff]
    %v111 = vld [vmem:[#allocation2 + $0x1d8] sm:$0xff]
    %v112 = vld [vmem:[#allocation2 + $0x1e0] sm:$0xff]
    %v113 = vld [vmem:[#allocation2 + $0x1e8] sm:$0xff]
    %v114 = vld [vmem:[#allocation2 + $0x1f0] sm:$0xff]
    %v115 = vld [vmem:[#allocation2 + $0x1f8] sm:$0xff]
    %v116 = vld [vmem:[#allocation2 + $0x200] sm:$0xff]
    %v117 = vld [vmem:[#allocation2 + $0x208] sm:$0xff]
    %v118 = vld [vmem:[#allocation2 + $0x210] sm:$0xff]
    %v119 = vld [vmem:[#allocation2 + $0x218] sm:$0xff]
    %v120 = vld [vmem:[#allocation2 + $0x220] sm:$0xff]
    %v121 = vld [vmem:[#allocation2 + $0x228] sm:$0xff]
    %v122 = vld [vmem:[#allocation2 + $0x230] sm:$0xff]
    %v123 = vld [vmem:[#allocation2 + $0x238] sm:$0xff]
    %v124 = vld [vmem:[#allocation2 + $0x240] sm:$0xff]
    %v125 = vld [vmem:[#allocation2 + $0x248] sm:$0xff]
    %v126 = vld [vmem:[#allocation2 + $0x250] sm:$0xff]
    %v127 = vld [vmem:[#allocation2 + $0x258] sm:$0xff]
    %v128 = vld [vmem:[#allocation2 + $0x260] sm:$0xff]
    %v129 = vld [vmem:[#allocation2 + $0x268] sm:$0xff]
    %v130 = vld [vmem:[#allocation2 + $0x270] sm:$0xff]
    %v131 = vld [vmem:[#allocation2 + $0x278] sm:$0xff]
    %v132 = vld [vmem:[#allocation2 + $0x280] sm:$0xff]
    %v133 = vld [vmem:[#allocation2 + $0x288] sm:$0xff]
    %v134 = vld [vmem:[#allocation2 + $0x290] sm:$0xff]
    %v135 = vld [vmem:[#allocation2 + $0x298] sm:$0xff]
    %v136 = vld [vmem:[#allocation2 + $0x2a0] sm:$0xff]
    %v137 = vld [vmem:[#allocation2 + $0x2a8] sm:$0xff]
    %v138 = vld [vmem:[#allocation2 + $0x2b0] sm:$0xff]
    %v139 = vld [vmem:[#allocation2 + $0x2b8] sm:$0xff]
    %v140 = vld [vmem:[#allocation2 + $0x2c0] sm:$0xff]
    %v141 = vld [vmem:[#allocation2 + $0x2c8] sm:$0xff]
    %v142 = vld [vmem:[#allocation2 + $0x2d0] sm:$0xff]
    %v143 = vld [vmem:[#allocation2 + $0x2d8] sm:$0xff]
    %v144 = vld [vmem:[#allocation2 + $0x2e0] sm:$0xff]
    %v145 = vld [vmem:[#allocation2 + $0x2e8] sm:$0xff]
    %v146 = vld [vmem:[#allocation2 + $0x2f0] sm:$0xff]
    %v147 = vld [vmem:[#allocation2 + $0x2f8] sm:$0xff]
    %v148 = vld [vmem:[#allocation2 + $0x300] sm:$0xff]
    %v149 = vld [vmem:[#allocation2 + $0x308] sm:$0xff]
    %v150 = vld [vmem:[#allocation2 + $0x310] sm:$0xff]
    %v151 = vld [vmem:[#allocation2 + $0x318] sm:$0xff]
    %v152 = vld [vmem:[#allocation2 + $0x320] sm:$0xff]
    %v153 = vld [vmem:[#allocation2 + $0x328] sm:$0xff]
    %v154 = vld [vmem:[#allocation2 + $0x330] sm:$0xff]
    %v155 = vld [vmem:[#allocation2 + $0x338] sm:$0xff]
    %v156 = vld [vmem:[#allocation2 + $0x340] sm:$0xff]
    %v157 = vld [vmem:[#allocation2 + $0x348] sm:$0xff]
    %v158 = vld [vmem:[#allocation2 + $0x350] sm:$0xff]
    %v159 = vld [vmem:[#allocation2 + $0x358] sm:$0xff]
    %v160 = vld [vmem:[#allocation2 + $0x360] sm:$0xff]
    %v161 = vld [vmem:[#allocation2 + $0x368] sm:$0xff]
    %v162 = vld [vmem:[#allocation2 + $0x370] sm:$0xff]
    %v163 = vld [vmem:[#allocation2 + $0x378] sm:$0xff]
    %v164 = vld [vmem:[#allocation2 + $0x380] sm:$0xff]
    %v165 = vld [vmem:[#allocation2 + $0x388] sm:$0xff]
    %v166 = vld [vmem:[#allocation2 + $0x390] sm:$0xff]
    %v167 = vld [vmem:[#allocation2 + $0x398] sm:$0xff]
    %v168 = vld [vmem:[#allocation2 + $0x3a0] sm:$0xff]
    %v169 = vld [vmem:[#allocation2 + $0x3a8] sm:$0xff]
    %v170 = vld [vmem:[#allocation2 + $0x3b0] sm:$0xff]
    %v171 = vld [vmem:[#allocation2 + $0x3b8] sm:$0xff]
    %v172 = vld [vmem:[#allocation2 + $0x3c0] sm:$0xff]
    %v173 = vld [vmem:[#allocation2 + $0x3c8] sm:$0xff]
    %v174 = vld [vmem:[#allocation2 + $0x3d0] sm:$0xff]
    %v175 = vld [vmem:[#allocation2 + $0x3d8] sm:$0xff]
    %v176 = vld [vmem:[#allocation2 + $0x3e0] sm:$0xff]
    %v177 = vld [vmem:[#allocation2 + $0x3e8] sm:$0xff]
    %v178 = vld [vmem:[#allocation2 + $0x3f0] sm:$0xff]
    %v179 = vld [vmem:[#allocation2 + $0x3f8] sm:$0xff]
    %v180 = vld [vmem:[%s2] sm:$0xf]
    %v182 = vlaneseq
    %v183 = vshrl.u32 %v182, 7
    %v184 = vsub.s32 0, %v183
    %v185 = vrot.slane %v180, %v184
    %v186 = vlaneseq
    %v187 = vshrl.u32 %v186, 7
    %v188 = vsub.s32 1, %v187
    %v189 = vrot.slane %v180, %v188
    %v190 = vlaneseq
    %v191 = vshrl.u32 %v190, 7
    %v192 = vsub.s32 2, %v191
    %v193 = vrot.slane %v180, %v192
    %v194 = vlaneseq
    %v195 = vshrl.u32 %v194, 7
    %v196 = vsub.s32 3, %v195
    %v197 = vrot.slane %v180, %v196
    %v204 = vunpack.c.l.b16 %v50
    %v205 = vunpack.c.h.b16 %v50
    %v206 = vunpack.c.l.b16 %v51
    %v207 = vunpack.c.h.b16 %v51
    %v208 = vpack.c.b16 %v204, %v204
    %v209 = vpack.c.b16 %v205, %v205
    %v210 = vpack.c.b16 %v206, %v206
    %v211 = vpack.c.b16 %v207, %v207
    %v344 = vunpack.c.l.b16 %v52
    %v345 = vunpack.c.h.b16 %v52
    %v346 = vunpack.c.l.b16 %v53
    %v347 = vunpack.c.h.b16 %v53
    %v348 = vunpack.c.l.b16 %v54
    %v349 = vunpack.c.h.b16 %v54
    %v350 = vunpack.c.l.b16 %v55
    %v351 = vunpack.c.h.b16 %v55
    %v352 = vunpack.c.l.b16 %v56
    %v353 = vunpack.c.h.b16 %v56
    %v354 = vunpack.c.l.b16 %v57
    %v355 = vunpack.c.h.b16 %v57
    %v356 = vunpack.c.l.b16 %v58
    %v357 = vunpack.c.h.b16 %v58
    %v358 = vunpack.c.l.b16 %v59
    %v359 = vunpack.c.h.b16 %v59
    %v360 = vunpack.c.l.b16 %v60
    %v361 = vunpack.c.h.b16 %v60
    %v362 = vunpack.c.l.b16 %v61
    %v363 = vunpack.c.h.b16 %v61
    %v364 = vunpack.c.l.b16 %v62
    %v365 = vunpack.c.h.b16 %v62
    %v366 = vunpack.c.l.b16 %v63
    %v367 = vunpack.c.h.b16 %v63
    %v368 = vunpack.c.l.b16 %v64
    %v369 = vunpack.c.h.b16 %v64
    %v370 = vunpack.c.l.b16 %v65
    %v371 = vunpack.c.h.b16 %v65
    %v372 = vunpack.c.l.b16 %v66
    %v373 = vunpack.c.h.b16 %v66
    %v374 = vunpack.c.l.b16 %v67
    %v375 = vunpack.c.h.b16 %v67
    %v376 = vunpack.c.l.b16 %v68
    %v377 = vunpack.c.h.b16 %v68
    %v378 = vunpack.c.l.b16 %v69
    %v379 = vunpack.c.h.b16 %v69
    %v380 = vunpack.c.l.b16 %v70
    %v381 = vunpack.c.h.b16 %v70
    %v382 = vunpack.c.l.b16 %v71
    %v383 = vunpack.c.h.b16 %v71
    %v384 = vunpack.c.l.b16 %v72
    %v385 = vunpack.c.h.b16 %v72
    %v386 = vunpack.c.l.b16 %v73
    %v387 = vunpack.c.h.b16 %v73
    %v388 = vunpack.c.l.b16 %v74
    %v389 = vunpack.c.h.b16 %v74
    %v390 = vunpack.c.l.b16 %v75
    %v391 = vunpack.c.h.b16 %v75
    %v392 = vunpack.c.l.b16 %v76
    %v393 = vunpack.c.h.b16 %v76
    %v394 = vunpack.c.l.b16 %v77
    %v395 = vunpack.c.h.b16 %v77
    %v396 = vunpack.c.l.b16 %v78
    %v397 = vunpack.c.h.b16 %v78
    %v398 = vunpack.c.l.b16 %v79
    %v399 = vunpack.c.h.b16 %v79
    %v400 = vunpack.c.l.b16 %v80
    %v401 = vunpack.c.h.b16 %v80
    %v402 = vunpack.c.l.b16 %v81
    %v403 = vunpack.c.h.b16 %v81
    %v404 = vunpack.c.l.b16 %v82
    %v405 = vunpack.c.h.b16 %v82
    %v406 = vunpack.c.l.b16 %v83
    %v407 = vunpack.c.h.b16 %v83
    %v408 = vunpack.c.l.b16 %v84
    %v409 = vunpack.c.h.b16 %v84
    %v410 = vunpack.c.l.b16 %v85
    %v411 = vunpack.c.h.b16 %v85
    %v412 = vunpack.c.l.b16 %v86
    %v413 = vunpack.c.h.b16 %v86
    %v414 = vunpack.c.l.b16 %v87
    %v415 = vunpack.c.h.b16 %v87
    %v416 = vunpack.c.l.b16 %v88
    %v417 = vunpack.c.h.b16 %v88
    %v418 = vunpack.c.l.b16 %v89
    %v419 = vunpack.c.h.b16 %v89
    %v420 = vunpack.c.l.b16 %v90
    %v421 = vunpack.c.h.b16 %v90
    %v422 = vunpack.c.l.b16 %v91
    %v423 = vunpack.c.h.b16 %v91
    %v424 = vunpack.c.l.b16 %v92
    %v425 = vunpack.c.h.b16 %v92
    %v426 = vunpack.c.l.b16 %v93
    %v427 = vunpack.c.h.b16 %v93
    %v428 = vunpack.c.l.b16 %v94
    %v429 = vunpack.c.h.b16 %v94
    %v430 = vunpack.c.l.b16 %v95
    %v431 = vunpack.c.h.b16 %v95
    %v432 = vunpack.c.l.b16 %v96
    %v433 = vunpack.c.h.b16 %v96
    %v434 = vunpack.c.l.b16 %v97
    %v435 = vunpack.c.h.b16 %v97
    %v436 = vunpack.c.l.b16 %v98
    %v437 = vunpack.c.h.b16 %v98
    %v438 = vunpack.c.l.b16 %v99
    %v439 = vunpack.c.h.b16 %v99
    %v440 = vunpack.c.l.b16 %v100
    %v441 = vunpack.c.h.b16 %v100
    %v442 = vunpack.c.l.b16 %v101
    %v443 = vunpack.c.h.b16 %v101
    %v444 = vunpack.c.l.b16 %v102
    %v445 = vunpack.c.h.b16 %v102
    %v446 = vunpack.c.l.b16 %v103
    %v447 = vunpack.c.h.b16 %v103
    %v448 = vunpack.c.l.b16 %v104
    %v449 = vunpack.c.h.b16 %v104
    %v450 = vunpack.c.l.b16 %v105
    %v451 = vunpack.c.h.b16 %v105
    %v452 = vunpack.c.l.b16 %v106
    %v453 = vunpack.c.h.b16 %v106
    %v454 = vunpack.c.l.b16 %v107
    %v455 = vunpack.c.h.b16 %v107
    %v456 = vunpack.c.l.b16 %v108
    %v457 = vunpack.c.h.b16 %v108
    %v458 = vunpack.c.l.b16 %v109
    %v459 = vunpack.c.h.b16 %v109
    %v460 = vunpack.c.l.b16 %v110
    %v461 = vunpack.c.h.b16 %v110
    %v462 = vunpack.c.l.b16 %v111
    %v463 = vunpack.c.h.b16 %v111
    %v464 = vunpack.c.l.b16 %v112
    %v465 = vunpack.c.h.b16 %v112
    %v466 = vunpack.c.l.b16 %v113
    %v467 = vunpack.c.h.b16 %v113
    %v468 = vunpack.c.l.b16 %v114
    %v469 = vunpack.c.h.b16 %v114
    %v470 = vunpack.c.l.b16 %v115
    %v471 = vunpack.c.h.b16 %v115
    %v472 = vunpack.c.l.b16 %v116
    %v473 = vunpack.c.h.b16 %v116
    %v474 = vunpack.c.l.b16 %v117
    %v475 = vunpack.c.h.b16 %v117
    %v476 = vunpack.c.l.b16 %v118
    %v477 = vunpack.c.h.b16 %v118
    %v478 = vunpack.c.l.b16 %v119
    %v479 = vunpack.c.h.b16 %v119
    %v480 = vunpack.c.l.b16 %v120
    %v481 = vunpack.c.h.b16 %v120
    %v482 = vunpack.c.l.b16 %v121
    %v483 = vunpack.c.h.b16 %v121
    %v484 = vunpack.c.l.b16 %v122
    %v485 = vunpack.c.h.b16 %v122
    %v486 = vunpack.c.l.b16 %v123
    %v487 = vunpack.c.h.b16 %v123
    %v488 = vunpack.c.l.b16 %v124
    %v489 = vunpack.c.h.b16 %v124
    %v490 = vunpack.c.l.b16 %v125
    %v491 = vunpack.c.h.b16 %v125
    %v492 = vunpack.c.l.b16 %v126
    %v493 = vunpack.c.h.b16 %v126
    %v494 = vunpack.c.l.b16 %v127
    %v495 = vunpack.c.h.b16 %v127
    %v496 = vunpack.c.l.b16 %v128
    %v497 = vunpack.c.h.b16 %v128
    %v498 = vunpack.c.l.b16 %v129
    %v499 = vunpack.c.h.b16 %v129
    %v500 = vunpack.c.l.b16 %v130
    %v501 = vunpack.c.h.b16 %v130
    %v502 = vunpack.c.l.b16 %v131
    %v503 = vunpack.c.h.b16 %v131
    %v504 = vunpack.c.l.b16 %v132
    %v505 = vunpack.c.h.b16 %v132
    %v506 = vunpack.c.l.b16 %v133
    %v507 = vunpack.c.h.b16 %v133
    %v508 = vunpack.c.l.b16 %v134
    %v509 = vunpack.c.h.b16 %v134
    %v510 = vunpack.c.l.b16 %v135
    %v511 = vunpack.c.h.b16 %v135
    %v512 = vunpack.c.l.b16 %v136
    %v513 = vunpack.c.h.b16 %v136
    %v514 = vunpack.c.l.b16 %v137
    %v515 = vunpack.c.h.b16 %v137
    %v516 = vunpack.c.l.b16 %v138
    %v517 = vunpack.c.h.b16 %v138
    %v518 = vunpack.c.l.b16 %v139
    %v519 = vunpack.c.h.b16 %v139
    %v520 = vunpack.c.l.b16 %v140
    %v521 = vunpack.c.h.b16 %v140
    %v522 = vunpack.c.l.b16 %v141
    %v523 = vunpack.c.h.b16 %v141
    %v524 = vunpack.c.l.b16 %v142
    %v525 = vunpack.c.h.b16 %v142
    %v526 = vunpack.c.l.b16 %v143
    %v527 = vunpack.c.h.b16 %v143
    %v528 = vunpack.c.l.b16 %v144
    %v529 = vunpack.c.h.b16 %v144
    %v530 = vunpack.c.l.b16 %v145
    %v531 = vunpack.c.h.b16 %v145
    %v532 = vunpack.c.l.b16 %v146
    %v533 = vunpack.c.h.b16 %v146
    %v534 = vunpack.c.l.b16 %v147
    %v535 = vunpack.c.h.b16 %v147
    %v536 = vunpack.c.l.b16 %v148
    %v537 = vunpack.c.h.b16 %v148
    %v538 = vunpack.c.l.b16 %v149
    %v539 = vunpack.c.h.b16 %v149
    %v540 = vunpack.c.l.b16 %v150
    %v541 = vunpack.c.h.b16 %v150
    %v542 = vunpack.c.l.b16 %v151
    %v543 = vunpack.c.h.b16 %v151
    %v544 = vunpack.c.l.b16 %v152
    %v545 = vunpack.c.h.b16 %v152
    %v546 = vunpack.c.l.b16 %v153
    %v547 = vunpack.c.h.b16 %v153
    %v548 = vunpack.c.l.b16 %v154
    %v549 = vunpack.c.h.b16 %v154
    %v550 = vunpack.c.l.b16 %v155
    %v551 = vunpack.c.h.b16 %v155
    %v552 = vunpack.c.l.b16 %v156
    %v553 = vunpack.c.h.b16 %v156
    %v554 = vunpack.c.l.b16 %v157
    %v555 = vunpack.c.h.b16 %v157
    %v556 = vunpack.c.l.b16 %v158
    %v557 = vunpack.c.h.b16 %v158
    %v558 = vunpack.c.l.b16 %v159
    %v559 = vunpack.c.h.b16 %v159
    %v560 = vunpack.c.l.b16 %v160
    %v561 = vunpack.c.h.b16 %v160
    %v562 = vunpack.c.l.b16 %v161
    %v563 = vunpack.c.h.b16 %v161
    %v564 = vunpack.c.l.b16 %v162
    %v565 = vunpack.c.h.b16 %v162
    %v566 = vunpack.c.l.b16 %v163
    %v567 = vunpack.c.h.b16 %v163
    %v568 = vunpack.c.l.b16 %v164
    %v569 = vunpack.c.h.b16 %v164
    %v570 = vunpack.c.l.b16 %v165
    %v571 = vunpack.c.h.b16 %v165
    %v572 = vunpack.c.l.b16 %v166
    %v573 = vunpack.c.h.b16 %v166
    %v574 = vunpack.c.l.b16 %v167
    %v575 = vunpack.c.h.b16 %v167
    %v576 = vunpack.c.l.b16 %v168
    %v577 = vunpack.c.h.b16 %v168
    %v578 = vunpack.c.l.b16 %v169
    %v579 = vunpack.c.h.b16 %v169
    %v580 = vunpack.c.l.b16 %v170
    %v581 = vunpack.c.h.b16 %v170
    %v582 = vunpack.c.l.b16 %v171
    %v583 = vunpack.c.h.b16 %v171
    %v584 = vunpack.c.l.b16 %v172
    %v585 = vunpack.c.h.b16 %v172
    %v586 = vunpack.c.l.b16 %v173
    %v587 = vunpack.c.h.b16 %v173
    %v588 = vunpack.c.l.b16 %v174
    %v589 = vunpack.c.h.b16 %v174
    %v590 = vunpack.c.l.b16 %v175
    %v591 = vunpack.c.h.b16 %v175
    %v592 = vunpack.c.l.b16 %v176
    %v593 = vunpack.c.h.b16 %v176
    %v594 = vunpack.c.l.b16 %v177
    %v595 = vunpack.c.h.b16 %v177
    %v596 = vunpack.c.l.b16 %v178
    %v597 = vunpack.c.h.b16 %v178
    %v598 = vunpack.c.l.b16 %v179
    %v599 = vunpack.c.h.b16 %v179
    %v600 = vpack.c.b16 %v348, %v344
    %v601 = vpack.c.b16 %v349, %v345
    %v602 = vpack.c.b16 %v350, %v346
    %v603 = vpack.c.b16 %v351, %v347
    %v604 = vpack.c.b16 %v356, %v352
    %v605 = vpack.c.b16 %v357, %v353
    %v606 = vpack.c.b16 %v358, %v354
    %v607 = vpack.c.b16 %v359, %v355
    %v608 = vpack.c.b16 %v364, %v360
    %v609 = vpack.c.b16 %v365, %v361
    %v610 = vpack.c.b16 %v366, %v362
    %v611 = vpack.c.b16 %v367, %v363
    %v612 = vpack.c.b16 %v372, %v368
    %v613 = vpack.c.b16 %v373, %v369
    %v614 = vpack.c.b16 %v374, %v370
    %v615 = vpack.c.b16 %v375, %v371
    %v616 = vpack.c.b16 %v380, %v376
    %v617 = vpack.c.b16 %v381, %v377
    %v618 = vpack.c.b16 %v382, %v378
    %v619 = vpack.c.b16 %v383, %v379
    %v620 = vpack.c.b16 %v388, %v384
    %v621 = vpack.c.b16 %v389, %v385
    %v622 = vpack.c.b16 %v390, %v386
    %v623 = vpack.c.b16 %v391, %v387
    %v624 = vpack.c.b16 %v396, %v392
    %v625 = vpack.c.b16 %v397, %v393
    %v626 = vpack.c.b16 %v398, %v394
    %v627 = vpack.c.b16 %v399, %v395
    %v628 = vpack.c.b16 %v404, %v400
    %v629 = vpack.c.b16 %v405, %v401
    %v630 = vpack.c.b16 %v406, %v402
    %v631 = vpack.c.b16 %v407, %v403
    %v632 = vpack.c.b16 %v412, %v408
    %v633 = vpack.c.b16 %v413, %v409
    %v634 = vpack.c.b16 %v414, %v410
    %v635 = vpack.c.b16 %v415, %v411
    %v636 = vpack.c.b16 %v420, %v416
    %v637 = vpack.c.b16 %v421, %v417
    %v638 = vpack.c.b16 %v422, %v418
    %v639 = vpack.c.b16 %v423, %v419
    %v640 = vpack.c.b16 %v428, %v424
    %v641 = vpack.c.b16 %v429, %v425
    %v642 = vpack.c.b16 %v430, %v426
    %v643 = vpack.c.b16 %v431, %v427
    %v644 = vpack.c.b16 %v436, %v432
    %v645 = vpack.c.b16 %v437, %v433
    %v646 = vpack.c.b16 %v438, %v434
    %v647 = vpack.c.b16 %v439, %v435
    %v648 = vpack.c.b16 %v444, %v440
    %v649 = vpack.c.b16 %v445, %v441
    %v650 = vpack.c.b16 %v446, %v442
    %v651 = vpack.c.b16 %v447, %v443
    %v652 = vpack.c.b16 %v452, %v448
    %v653 = vpack.c.b16 %v453, %v449
    %v654 = vpack.c.b16 %v454, %v450
    %v655 = vpack.c.b16 %v455, %v451
    %v656 = vpack.c.b16 %v460, %v456
    %v657 = vpack.c.b16 %v461, %v457
    %v658 = vpack.c.b16 %v462, %v458
    %v659 = vpack.c.b16 %v463, %v459
    %v660 = vpack.c.b16 %v468, %v464
    %v661 = vpack.c.b16 %v469, %v465
    %v662 = vpack.c.b16 %v470, %v466
    %v663 = vpack.c.b16 %v471, %v467
    %v664 = vpack.c.b16 %v476, %v472
    %v665 = vpack.c.b16 %v477, %v473
    %v666 = vpack.c.b16 %v478, %v474
    %v667 = vpack.c.b16 %v479, %v475
    %v668 = vpack.c.b16 %v484, %v480
    %v669 = vpack.c.b16 %v485, %v481
    %v670 = vpack.c.b16 %v486, %v482
    %v671 = vpack.c.b16 %v487, %v483
    %v672 = vpack.c.b16 %v492, %v488
    %v673 = vpack.c.b16 %v493, %v489
    %v674 = vpack.c.b16 %v494, %v490
    %v675 = vpack.c.b16 %v495, %v491
    %v676 = vpack.c.b16 %v500, %v496
    %v677 = vpack.c.b16 %v501, %v497
    %v678 = vpack.c.b16 %v502, %v498
    %v679 = vpack.c.b16 %v503, %v499
    %v680 = vpack.c.b16 %v508, %v504
    %v681 = vpack.c.b16 %v509, %v505
    %v682 = vpack.c.b16 %v510, %v506
    %v683 = vpack.c.b16 %v511, %v507
    %v684 = vpack.c.b16 %v516, %v512
    %v685 = vpack.c.b16 %v517, %v513
    %v686 = vpack.c.b16 %v518, %v514
    %v687 = vpack.c.b16 %v519, %v515
    %v688 = vpack.c.b16 %v524, %v520
    %v689 = vpack.c.b16 %v525, %v521
    %v690 = vpack.c.b16 %v526, %v522
    %v691 = vpack.c.b16 %v527, %v523
    %v692 = vpack.c.b16 %v532, %v528
    %v693 = vpack.c.b16 %v533, %v529
    %v694 = vpack.c.b16 %v534, %v530
    %v695 = vpack.c.b16 %v535, %v531
    %v696 = vpack.c.b16 %v540, %v536
    %v697 = vpack.c.b16 %v541, %v537
    %v698 = vpack.c.b16 %v542, %v538
    %v699 = vpack.c.b16 %v543, %v539
    %v700 = vpack.c.b16 %v548, %v544
    %v701 = vpack.c.b16 %v549, %v545
    %v702 = vpack.c.b16 %v550, %v546
    %v703 = vpack.c.b16 %v551, %v547
    %v704 = vpack.c.b16 %v556, %v552
    %v705 = vpack.c.b16 %v557, %v553
    %v706 = vpack.c.b16 %v558, %v554
    %v707 = vpack.c.b16 %v559, %v555
    %v708 = vpack.c.b16 %v564, %v560
    %v709 = vpack.c.b16 %v565, %v561
    %v710 = vpack.c.b16 %v566, %v562
    %v711 = vpack.c.b16 %v567, %v563
    %v712 = vpack.c.b16 %v572, %v568
    %v713 = vpack.c.b16 %v573, %v569
    %v714 = vpack.c.b16 %v574, %v570
    %v715 = vpack.c.b16 %v575, %v571
    %v716 = vpack.c.b16 %v580, %v576
    %v717 = vpack.c.b16 %v581, %v577
    %v718 = vpack.c.b16 %v582, %v578
    %v719 = vpack.c.b16 %v583, %v579
    %v720 = vpack.c.b16 %v588, %v584
    %v721 = vpack.c.b16 %v589, %v585
    %v722 = vpack.c.b16 %v590, %v586
    %v723 = vpack.c.b16 %v591, %v587
    %v724 = vpack.c.b16 %v596, %v592
    %v725 = vpack.c.b16 %v597, %v593
    %v726 = vpack.c.b16 %v598, %v594
    %v727 = vpack.c.b16 %v599, %v595
    %856 = vmatprep.subr.bf16.mxu0 %v601
    %857 = vmatpush1.bf16.msra.mxu0 %v600
    %858 = vmatprep.subr.bf16.mxu0 %v605
    %859 = vmatpush1.bf16.msra.mxu0 %v604
    %860 = vmatprep.subr.bf16.mxu0 %v609
    %861 = vmatpush1.bf16.msra.mxu0 %v608
    %862 = vmatprep.subr.bf16.mxu0 %v613
    %863 = vmatpush1.bf16.msra.mxu0 %v612
    %864 = vmatprep.subr.bf16.mxu0 %v617
    %865 = vmatpush1.bf16.msra.mxu0 %v616
    %866 = vmatprep.subr.bf16.mxu0 %v621
    %867 = vmatpush1.bf16.msra.mxu0 %v620
    %868 = vmatprep.subr.bf16.mxu0 %v625
    %869 = vmatpush1.bf16.msra.mxu0 %v624
    %870 = vmatprep.subr.bf16.mxu0 %v629
    %871 = vmatpush1.bf16.msra.mxu0 %v628
    %872 = vmatprep.subr.bf16.mxu0 %v633
    %873 = vmatpush1.bf16.msra.mxu0 %v632
    %874 = vmatprep.subr.bf16.mxu0 %v637
    %875 = vmatpush1.bf16.msra.mxu0 %v636
    %876 = vmatprep.subr.bf16.mxu0 %v641
    %877 = vmatpush1.bf16.msra.mxu0 %v640
    %878 = vmatprep.subr.bf16.mxu0 %v645
    %879 = vmatpush1.bf16.msra.mxu0 %v644
    %880 = vmatprep.subr.bf16.mxu0 %v649
    %881 = vmatpush1.bf16.msra.mxu0 %v648
    %882 = vmatprep.subr.bf16.mxu0 %v653
    %883 = vmatpush1.bf16.msra.mxu0 %v652
    %884 = vmatprep.subr.bf16.mxu0 %v657
    %885 = vmatpush1.bf16.msra.mxu0 %v656
    %886 = vmatprep.subr.bf16.mxu0 %v661
    %887 = vmatpush1.bf16.msra.mxu0 %v660
    %888 = vmatprep.mubr.bf16.mxu0 %v209
    %889 = vmatmul.mubr.bf16.gmra.mrb[0].mxu0 %v208
    %v890 = vpop.f32.mrb[0].mxu0
    %v891 = vadd.f32 %v185, %v890
    %v892 = vpop.f32.mrb[0].mxu0
    %v893 = vadd.f32 %v189, %v892
    %v894 = vpop.f32.mrb[0].mxu0
    %v895 = vpop.f32.mrb[0].mxu0
    %896 = vdwg.mxu0
    %897 = vmatprep.subr.bf16.mxu0 %v665
    %898 = vmatpush1.bf16.msra.mxu0 %v664
    %899 = vmatprep.subr.bf16.mxu0 %v669
    %900 = vmatpush1.bf16.msra.mxu0 %v668
    %901 = vmatprep.subr.bf16.mxu0 %v673
    %902 = vmatpush1.bf16.msra.mxu0 %v672
    %903 = vmatprep.subr.bf16.mxu0 %v677
    %904 = vmatpush1.bf16.msra.mxu0 %v676
    %905 = vmatprep.subr.bf16.mxu0 %v681
    %906 = vmatpush1.bf16.msra.mxu0 %v680
    %907 = vmatprep.subr.bf16.mxu0 %v685
    %908 = vmatpush1.bf16.msra.mxu0 %v684
    %909 = vmatprep.subr.bf16.mxu0 %v689
    %910 = vmatpush1.bf16.msra.mxu0 %v688
    %911 = vmatprep.subr.bf16.mxu0 %v693
    %912 = vmatpush1.bf16.msra.mxu0 %v692
    %913 = vmatprep.subr.bf16.mxu0 %v697
    %914 = vmatpush1.bf16.msra.mxu0 %v696
    %915 = vmatprep.subr.bf16.mxu0 %v701
    %916 = vmatpush1.bf16.msra.mxu0 %v700
    %917 = vmatprep.subr.bf16.mxu0 %v705
    %918 = vmatpush1.bf16.msra.mxu0 %v704
    %919 = vmatprep.subr.bf16.mxu0 %v709
    %920 = vmatpush1.bf16.msra.mxu0 %v708
    %921 = vmatprep.subr.bf16.mxu0 %v713
    %922 = vmatpush1.bf16.msra.mxu0 %v712
    %923 = vmatprep.subr.bf16.mxu0 %v717
    %924 = vmatpush1.bf16.msra.mxu0 %v716
    %925 = vmatprep.subr.bf16.mxu0 %v721
    %926 = vmatpush1.bf16.msra.mxu0 %v720
    %927 = vmatprep.subr.bf16.mxu0 %v725
    %928 = vmatpush1.bf16.msra.mxu0 %v724
    %929 = vmatprep.mubr.bf16.mxu0 %v211
    %930 = vmatmul.mubr.bf16.gmra.mrb[0].mxu0 %v210
    %v931 = vpop.f32.mrb[0].mxu0
    %v932 = vadd.f32 %v891, %v931
    %v933 = vpop.f32.mrb[0].mxu0
    %v934 = vadd.f32 %v893, %v933
    %v935 = vpop.f32.mrb[0].mxu0
    %v936 = vpop.f32.mrb[0].mxu0
    %937 = vdwg.mxu0
    %938 = vmatprep.subr.bf16.mxu0 %v603
    %939 = vmatpush1.bf16.msra.mxu0 %v602
    %940 = vmatprep.subr.bf16.mxu0 %v607
    %941 = vmatpush1.bf16.msra.mxu0 %v606
    %942 = vmatprep.subr.bf16.mxu0 %v611
    %943 = vmatpush1.bf16.msra.mxu0 %v610
    %944 = vmatprep.subr.bf16.mxu0 %v615
    %945 = vmatpush1.bf16.msra.mxu0 %v614
    %946 = vmatprep.subr.bf16.mxu0 %v619
    %947 = vmatpush1.bf16.msra.mxu0 %v618
    %948 = vmatprep.subr.bf16.mxu0 %v623
    %949 = vmatpush1.bf16.msra.mxu0 %v622
    %950 = vmatprep.subr.bf16.mxu0 %v627
    %951 = vmatpush1.bf16.msra.mxu0 %v626
    %952 = vmatprep.subr.bf16.mxu0 %v631
    %953 = vmatpush1.bf16.msra.mxu0 %v630
    %954 = vmatprep.subr.bf16.mxu0 %v635
    %955 = vmatpush1.bf16.msra.mxu0 %v634
    %956 = vmatprep.subr.bf16.mxu0 %v639
    %957 = vmatpush1.bf16.msra.mxu0 %v638
    %958 = vmatprep.subr.bf16.mxu0 %v643
    %959 = vmatpush1.bf16.msra.mxu0 %v642
    %960 = vmatprep.subr.bf16.mxu0 %v647
    %961 = vmatpush1.bf16.msra.mxu0 %v646
    %962 = vmatprep.subr.bf16.mxu0 %v651
    %963 = vmatpush1.bf16.msra.mxu0 %v650
    %964 = vmatprep.subr.bf16.mxu0 %v655
    %965 = vmatpush1.bf16.msra.mxu0 %v654
    %966 = vmatprep.subr.bf16.mxu0 %v659
    %967 = vmatpush1.bf16.msra.mxu0 %v658
    %968 = vmatprep.subr.bf16.mxu0 %v663
    %969 = vmatpush1.bf16.msra.mxu0 %v662
    %970 = vmatprep.mubr.bf16.mxu0 %v209
    %971 = vmatmul.mubr.bf16.gmra.mrb[0].mxu0 %v208
    %v972 = vpop.f32.mrb[0].mxu0
    %v973 = vadd.f32 %v193, %v972
    %v974 = vpop.f32.mrb[0].mxu0
    %v975 = vadd.f32 %v197, %v974
    %v976 = vpop.f32.mrb[0].mxu0
    %v977 = vpop.f32.mrb[0].mxu0
    %978 = vdwg.mxu0
    %979 = vmatprep.subr.bf16.mxu0 %v667
    %980 = vmatpush1.bf16.msra.mxu0 %v666
    %981 = vmatprep.subr.bf16.mxu0 %v671
    %982 = vmatpush1.bf16.msra.mxu0 %v670
    %983 = vmatprep.subr.bf16.mxu0 %v675
    %984 = vmatpush1.bf16.msra.mxu0 %v674
    %985 = vmatprep.subr.bf16.mxu0 %v679
    %986 = vmatpush1.bf16.msra.mxu0 %v678
    %987 = vmatprep.subr.bf16.mxu0 %v683
    %988 = vmatpush1.bf16.msra.mxu0 %v682
    %989 = vmatprep.subr.bf16.mxu0 %v687
    %990 = vmatpush1.bf16.msra.mxu0 %v686
    %991 = vmatprep.subr.bf16.mxu0 %v691
    %992 = vmatpush1.bf16.msra.mxu0 %v690
    %993 = vmatprep.subr.bf16.mxu0 %v695
    %994 = vmatpush1.bf16.msra.mxu0 %v694
    %995 = vmatprep.subr.bf16.mxu0 %v699
    %996 = vmatpush1.bf16.msra.mxu0 %v698
    %997 = vmatprep.subr.bf16.mxu0 %v703
    %998 = vmatpush1.bf16.msra.mxu0 %v702
    %999 = vmatprep.subr.bf16.mxu0 %v707
    %1000 = vmatpush1.bf16.msra.mxu0 %v706
    %1001 = vmatprep.subr.bf16.mxu0 %v711
    %1002 = vmatpush1.bf16.msra.mxu0 %v710
    %1003 = vmatprep.subr.bf16.mxu0 %v715
    %1004 = vmatpush1.bf16.msra.mxu0 %v714
    %1005 = vmatprep.subr.bf16.mxu0 %v719
    %1006 = vmatpush1.bf16.msra.mxu0 %v718
    %1007 = vmatprep.subr.bf16.mxu0 %v723
    %1008 = vmatpush1.bf16.msra.mxu0 %v722
    %1009 = vmatprep.subr.bf16.mxu0 %v727
    %1010 = vmatpush1.bf16.msra.mxu0 %v726
    %1011 = vmatprep.mubr.bf16.mxu0 %v211
    %1012 = vmatmul.mubr.bf16.gmra.mrb[0].mxu0 %v210
    %v1013 = vpop.f32.mrb[0].mxu0
    %v1014 = vadd.f32 %v973, %v1013
    %v1015 = vpop.f32.mrb[0].mxu0
    %v1016 = vadd.f32 %v975, %v1015
    %v1017 = vpop.f32.mrb[0].mxu0
    %v1018 = vpop.f32.mrb[0].mxu0
    %1019 = vdwg.mxu0
    %1020 = vst [vmem:[%s5] sm:$0xff] %v932
    %1021 = vst [vmem:[%s5 + $0x8] sm:$0xff] %v934
    %1022 = vst [vmem:[%s5 + $0x10] sm:$0xff] %v1014
    %1023 = vst [vmem:[%s5 + $0x18] sm:$0xff] %v1016
    %v1024 = vmax.f32 %v932, 0.0
    %v1025 = vmax.f32 %v934, 0.0
    %v1026 = vmax.f32 %v1014, 0.0
    %v1027 = vmax.f32 %v1016, 0.0
    %v1028 = vpack.c.bf16 %v1024, %v1024
    %v1029 = vpack.c.bf16 %v1025, %v1025
    %v1030 = vpack.c.bf16 %v1026, %v1026
    %v1031 = vpack.c.bf16 %v1027, %v1027
    %v1032 = vld [vmem:[#allocation4] sm:$0xff]
    %v1033 = vld [vmem:[#allocation4 + $0x8] sm:$0xff]
    %v1034 = vld [vmem:[#allocation4 + $0x10] sm:$0xff]
    %v1035 = vld [vmem:[#allocation4 + $0x18] sm:$0xff]
    %v1036 = vld [vmem:[#allocation4 + $0x20] sm:$0xff]
    %v1037 = vld [vmem:[#allocation4 + $0x28] sm:$0xff]
    %v1038 = vld [vmem:[#allocation4 + $0x30] sm:$0xff]
    %v1039 = vld [vmem:[#allocation4 + $0x38] sm:$0xff]
    %v1040 = vld [vmem:[#allocation4 + $0x40] sm:$0xff]
    %v1041 = vld [vmem:[#allocation4 + $0x48] sm:$0xff]
    %v1042 = vld [vmem:[#allocation4 + $0x50] sm:$0xff]
    %v1043 = vld [vmem:[#allocation4 + $0x58] sm:$0xff]
    %v1044 = vld [vmem:[#allocation4 + $0x60] sm:$0xff]
    %v1045 = vld [vmem:[#allocation4 + $0x68] sm:$0xff]
    %v1046 = vld [vmem:[#allocation4 + $0x70] sm:$0xff]
    %v1047 = vld [vmem:[#allocation4 + $0x78] sm:$0xff]
    %v1048 = vld [vmem:[#allocation4 + $0x80] sm:$0xff]
    %v1049 = vld [vmem:[#allocation4 + $0x88] sm:$0xff]
    %v1050 = vld [vmem:[#allocation4 + $0x90] sm:$0xff]
    %v1051 = vld [vmem:[#allocation4 + $0x98] sm:$0xff]
    %v1052 = vld [vmem:[#allocation4 + $0xa0] sm:$0xff]
    %v1053 = vld [vmem:[#allocation4 + $0xa8] sm:$0xff]
    %v1054 = vld [vmem:[#allocation4 + $0xb0] sm:$0xff]
    %v1055 = vld [vmem:[#allocation4 + $0xb8] sm:$0xff]
    %v1056 = vld [vmem:[#allocation4 + $0xc0] sm:$0xff]
    %v1057 = vld [vmem:[#allocation4 + $0xc8] sm:$0xff]
    %v1058 = vld [vmem:[#allocation4 + $0xd0] sm:$0xff]
    %v1059 = vld [vmem:[#allocation4 + $0xd8] sm:$0xff]
    %v1060 = vld [vmem:[#allocation4 + $0xe0] sm:$0xff]
    %v1061 = vld [vmem:[#allocation4 + $0xe8] sm:$0xff]
    %v1062 = vld [vmem:[#allocation4 + $0xf0] sm:$0xff]
    %v1063 = vld [vmem:[#allocation4 + $0xf8] sm:$0xff]
    %v1064 = vld [vmem:[#allocation4 + $0x100] sm:$0xff]
    %v1065 = vld [vmem:[#allocation4 + $0x108] sm:$0xff]
    %v1066 = vld [vmem:[#allocation4 + $0x110] sm:$0xff]
    %v1067 = vld [vmem:[#allocation4 + $0x118] sm:$0xff]
    %v1068 = vld [vmem:[#allocation4 + $0x120] sm:$0xff]
    %v1069 = vld [vmem:[#allocation4 + $0x128] sm:$0xff]
    %v1070 = vld [vmem:[#allocation4 + $0x130] sm:$0xff]
    %v1071 = vld [vmem:[#allocation4 + $0x138] sm:$0xff]
    %v1072 = vld [vmem:[#allocation4 + $0x140] sm:$0xff]
    %v1073 = vld [vmem:[#allocation4 + $0x148] sm:$0xff]
    %v1074 = vld [vmem:[#allocation4 + $0x150] sm:$0xff]
    %v1075 = vld [vmem:[#allocation4 + $0x158] sm:$0xff]
    %v1076 = vld [vmem:[#allocation4 + $0x160] sm:$0xff]
    %v1077 = vld [vmem:[#allocation4 + $0x168] sm:$0xff]
    %v1078 = vld [vmem:[#allocation4 + $0x170] sm:$0xff]
    %v1079 = vld [vmem:[#allocation4 + $0x178] sm:$0xff]
    %v1080 = vld [vmem:[#allocation4 + $0x180] sm:$0xff]
    %v1081 = vld [vmem:[#allocation4 + $0x188] sm:$0xff]
    %v1082 = vld [vmem:[#allocation4 + $0x190] sm:$0xff]
    %v1083 = vld [vmem:[#allocation4 + $0x198] sm:$0xff]
    %v1084 = vld [vmem:[#allocation4 + $0x1a0] sm:$0xff]
    %v1085 = vld [vmem:[#allocation4 + $0x1a8] sm:$0xff]
    %v1086 = vld [vmem:[#allocation4 + $0x1b0] sm:$0xff]
    %v1087 = vld [vmem:[#allocation4 + $0x1b8] sm:$0xff]
    %v1088 = vld [vmem:[#allocation4 + $0x1c0] sm:$0xff]
    %v1089 = vld [vmem:[#allocation4 + $0x1c8] sm:$0xff]
    %v1090 = vld [vmem:[#allocation4 + $0x1d0] sm:$0xff]
    %v1091 = vld [vmem:[#allocation4 + $0x1d8] sm:$0xff]
    %v1092 = vld [vmem:[#allocation4 + $0x1e0] sm:$0xff]
    %v1093 = vld [vmem:[#allocation4 + $0x1e8] sm:$0xff]
    %v1094 = vld [vmem:[#allocation4 + $0x1f0] sm:$0xff]
    %v1095 = vld [vmem:[#allocation4 + $0x1f8] sm:$0xff]
    %v1096 = vld [vmem:[#allocation4 + $0x200] sm:$0xff]
    %v1097 = vld [vmem:[#allocation4 + $0x208] sm:$0xff]
    %v1098 = vld [vmem:[#allocation4 + $0x210] sm:$0xff]
    %v1099 = vld [vmem:[#allocation4 + $0x218] sm:$0xff]
    %v1100 = vld [vmem:[#allocation4 + $0x220] sm:$0xff]
    %v1101 = vld [vmem:[#allocation4 + $0x228] sm:$0xff]
    %v1102 = vld [vmem:[#allocation4 + $0x230] sm:$0xff]
    %v1103 = vld [vmem:[#allocation4 + $0x238] sm:$0xff]
    %v1104 = vld [vmem:[#allocation4 + $0x240] sm:$0xff]
    %v1105 = vld [vmem:[#allocation4 + $0x248] sm:$0xff]
    %v1106 = vld [vmem:[#allocation4 + $0x250] sm:$0xff]
    %v1107 = vld [vmem:[#allocation4 + $0x258] sm:$0xff]
    %v1108 = vld [vmem:[#allocation4 + $0x260] sm:$0xff]
    %v1109 = vld [vmem:[#allocation4 + $0x268] sm:$0xff]
    %v1110 = vld [vmem:[#allocation4 + $0x270] sm:$0xff]
    %v1111 = vld [vmem:[#allocation4 + $0x278] sm:$0xff]
    %v1112 = vld [vmem:[#allocation4 + $0x280] sm:$0xff]
    %v1113 = vld [vmem:[#allocation4 + $0x288] sm:$0xff]
    %v1114 = vld [vmem:[#allocation4 + $0x290] sm:$0xff]
    %v1115 = vld [vmem:[#allocation4 + $0x298] sm:$0xff]
    %v1116 = vld [vmem:[#allocation4 + $0x2a0] sm:$0xff]
    %v1117 = vld [vmem:[#allocation4 + $0x2a8] sm:$0xff]
    %v1118 = vld [vmem:[#allocation4 + $0x2b0] sm:$0xff]
    %v1119 = vld [vmem:[#allocation4 + $0x2b8] sm:$0xff]
    %v1120 = vld [vmem:[#allocation4 + $0x2c0] sm:$0xff]
    %v1121 = vld [vmem:[#allocation4 + $0x2c8] sm:$0xff]
    %v1122 = vld [vmem:[#allocation4 + $0x2d0] sm:$0xff]
    %v1123 = vld [vmem:[#allocation4 + $0x2d8] sm:$0xff]
    %v1124 = vld [vmem:[#allocation4 + $0x2e0] sm:$0xff]
    %v1125 = vld [vmem:[#allocation4 + $0x2e8] sm:$0xff]
    %v1126 = vld [vmem:[#allocation4 + $0x2f0] sm:$0xff]
    %v1127 = vld [vmem:[#allocation4 + $0x2f8] sm:$0xff]
    %v1128 = vld [vmem:[#allocation4 + $0x300] sm:$0xff]
    %v1129 = vld [vmem:[#allocation4 + $0x308] sm:$0xff]
    %v1130 = vld [vmem:[#allocation4 + $0x310] sm:$0xff]
    %v1131 = vld [vmem:[#allocation4 + $0x318] sm:$0xff]
    %v1132 = vld [vmem:[#allocation4 + $0x320] sm:$0xff]
    %v1133 = vld [vmem:[#allocation4 + $0x328] sm:$0xff]
    %v1134 = vld [vmem:[#allocation4 + $0x330] sm:$0xff]
    %v1135 = vld [vmem:[#allocation4 + $0x338] sm:$0xff]
    %v1136 = vld [vmem:[#allocation4 + $0x340] sm:$0xff]
    %v1137 = vld [vmem:[#allocation4 + $0x348] sm:$0xff]
    %v1138 = vld [vmem:[#allocation4 + $0x350] sm:$0xff]
    %v1139 = vld [vmem:[#allocation4 + $0x358] sm:$0xff]
    %v1140 = vld [vmem:[#allocation4 + $0x360] sm:$0xff]
    %v1141 = vld [vmem:[#allocation4 + $0x368] sm:$0xff]
    %v1142 = vld [vmem:[#allocation4 + $0x370] sm:$0xff]
    %v1143 = vld [vmem:[#allocation4 + $0x378] sm:$0xff]
    %v1144 = vld [vmem:[#allocation4 + $0x380] sm:$0xff]
    %v1145 = vld [vmem:[#allocation4 + $0x388] sm:$0xff]
    %v1146 = vld [vmem:[#allocation4 + $0x390] sm:$0xff]
    %v1147 = vld [vmem:[#allocation4 + $0x398] sm:$0xff]
    %v1148 = vld [vmem:[#allocation4 + $0x3a0] sm:$0xff]
    %v1149 = vld [vmem:[#allocation4 + $0x3a8] sm:$0xff]
    %v1150 = vld [vmem:[#allocation4 + $0x3b0] sm:$0xff]
    %v1151 = vld [vmem:[#allocation4 + $0x3b8] sm:$0xff]
    %v1152 = vld [vmem:[#allocation4 + $0x3c0] sm:$0xff]
    %v1153 = vld [vmem:[#allocation4 + $0x3c8] sm:$0xff]
    %v1154 = vld [vmem:[#allocation4 + $0x3d0] sm:$0xff]
    %v1155 = vld [vmem:[#allocation4 + $0x3d8] sm:$0xff]
    %v1156 = vld [vmem:[#allocation4 + $0x3e0] sm:$0xff]
    %v1157 = vld [vmem:[#allocation4 + $0x3e8] sm:$0xff]
    %v1158 = vld [vmem:[#allocation4 + $0x3f0] sm:$0xff]
    %v1159 = vld [vmem:[#allocation4 + $0x3f8] sm:$0xff]
    %v1160 = vld [vmem:[%s4] sm:$0xf]
    %v1162 = vlaneseq
    %v1163 = vshrl.u32 %v1162, 7
    %v1164 = vsub.s32 0, %v1163
    %v1165 = vrot.slane %v1160, %v1164
    %v1166 = vlaneseq
    %v1167 = vshrl.u32 %v1166, 7
    %v1168 = vsub.s32 1, %v1167
    %v1169 = vrot.slane %v1160, %v1168
    %v1170 = vlaneseq
    %v1171 = vshrl.u32 %v1170, 7
    %v1172 = vsub.s32 2, %v1171
    %v1173 = vrot.slane %v1160, %v1172
    %v1174 = vlaneseq
    %v1175 = vshrl.u32 %v1174, 7
    %v1176 = vsub.s32 3, %v1175
    %v1177 = vrot.slane %v1160, %v1176
    %v1310 = vunpack.c.l.b16 %v1032
    %v1311 = vunpack.c.h.b16 %v1032
    %v1312 = vunpack.c.l.b16 %v1033
    %v1313 = vunpack.c.h.b16 %v1033
    %v1314 = vunpack.c.l.b16 %v1034
    %v1315 = vunpack.c.h.b16 %v1034
    %v1316 = vunpack.c.l.b16 %v1035
    %v1317 = vunpack.c.h.b16 %v1035
    %v1318 = vunpack.c.l.b16 %v1036
    %v1319 = vunpack.c.h.b16 %v1036
    %v1320 = vunpack.c.l.b16 %v1037
    %v1321 = vunpack.c.h.b16 %v1037
    %v1322 = vunpack.c.l.b16 %v1038
    %v1323 = vunpack.c.h.b16 %v1038
    %v1324 = vunpack.c.l.b16 %v1039
    %v1325 = vunpack.c.h.b16 %v1039
    %v1326 = vunpack.c.l.b16 %v1040
    %v1327 = vunpack.c.h.b16 %v1040
    %v1328 = vunpack.c.l.b16 %v1041
    %v1329 = vunpack.c.h.b16 %v1041
    %v1330 = vunpack.c.l.b16 %v1042
    %v1331 = vunpack.c.h.b16 %v1042
    %v1332 = vunpack.c.l.b16 %v1043
    %v1333 = vunpack.c.h.b16 %v1043
    %v1334 = vunpack.c.l.b16 %v1044
    %v1335 = vunpack.c.h.b16 %v1044
    %v1336 = vunpack.c.l.b16 %v1045
    %v1337 = vunpack.c.h.b16 %v1045
    %v1338 = vunpack.c.l.b16 %v1046
    %v1339 = vunpack.c.h.b16 %v1046
    %v1340 = vunpack.c.l.b16 %v1047
    %v1341 = vunpack.c.h.b16 %v1047
    %v1342 = vunpack.c.l.b16 %v1048
    %v1343 = vunpack.c.h.b16 %v1048
    %v1344 = vunpack.c.l.b16 %v1049
    %v1345 = vunpack.c.h.b16 %v1049
    %v1346 = vunpack.c.l.b16 %v1050
    %v1347 = vunpack.c.h.b16 %v1050
    %v1348 = vunpack.c.l.b16 %v1051
    %v1349 = vunpack.c.h.b16 %v1051
    %v1350 = vunpack.c.l.b16 %v1052
    %v1351 = vunpack.c.h.b16 %v1052
    %v1352 = vunpack.c.l.b16 %v1053
    %v1353 = vunpack.c.h.b16 %v1053
    %v1354 = vunpack.c.l.b16 %v1054
    %v1355 = vunpack.c.h.b16 %v1054
    %v1356 = vunpack.c.l.b16 %v1055
    %v1357 = vunpack.c.h.b16 %v1055
    %v1358 = vunpack.c.l.b16 %v1056
    %v1359 = vunpack.c.h.b16 %v1056
    %v1360 = vunpack.c.l.b16 %v1057
    %v1361 = vunpack.c.h.b16 %v1057
    %v1362 = vunpack.c.l.b16 %v1058
    %v1363 = vunpack.c.h.b16 %v1058
    %v1364 = vunpack.c.l.b16 %v1059
    %v1365 = vunpack.c.h.b16 %v1059
    %v1366 = vunpack.c.l.b16 %v1060
    %v1367 = vunpack.c.h.b16 %v1060
    %v1368 = vunpack.c.l.b16 %v1061
    %v1369 = vunpack.c.h.b16 %v1061
    %v1370 = vunpack.c.l.b16 %v1062
    %v1371 = vunpack.c.h.b16 %v1062
    %v1372 = vunpack.c.l.b16 %v1063
    %v1373 = vunpack.c.h.b16 %v1063
    %v1374 = vunpack.c.l.b16 %v1064
    %v1375 = vunpack.c.h.b16 %v1064
    %v1376 = vunpack.c.l.b16 %v1065
    %v1377 = vunpack.c.h.b16 %v1065
    %v1378 = vunpack.c.l.b16 %v1066
    %v1379 = vunpack.c.h.b16 %v1066
    %v1380 = vunpack.c.l.b16 %v1067
    %v1381 = vunpack.c.h.b16 %v1067
    %v1382 = vunpack.c.l.b16 %v1068
    %v1383 = vunpack.c.h.b16 %v1068
    %v1384 = vunpack.c.l.b16 %v1069
    %v1385 = vunpack.c.h.b16 %v1069
    %v1386 = vunpack.c.l.b16 %v1070
    %v1387 = vunpack.c.h.b16 %v1070
    %v1388 = vunpack.c.l.b16 %v1071
    %v1389 = vunpack.c.h.b16 %v1071
    %v1390 = vunpack.c.l.b16 %v1072
    %v1391 = vunpack.c.h.b16 %v1072
    %v1392 = vunpack.c.l.b16 %v1073
    %v1393 = vunpack.c.h.b16 %v1073
    %v1394 = vunpack.c.l.b16 %v1074
    %v1395 = vunpack.c.h.b16 %v1074
    %v1396 = vunpack.c.l.b16 %v1075
    %v1397 = vunpack.c.h.b16 %v1075
    %v1398 = vunpack.c.l.b16 %v1076
    %v1399 = vunpack.c.h.b16 %v1076
    %v1400 = vunpack.c.l.b16 %v1077
    %v1401 = vunpack.c.h.b16 %v1077
    %v1402 = vunpack.c.l.b16 %v1078
    %v1403 = vunpack.c.h.b16 %v1078
    %v1404 = vunpack.c.l.b16 %v1079
    %v1405 = vunpack.c.h.b16 %v1079
    %v1406 = vunpack.c.l.b16 %v1080
    %v1407 = vunpack.c.h.b16 %v1080
    %v1408 = vunpack.c.l.b16 %v1081
    %v1409 = vunpack.c.h.b16 %v1081
    %v1410 = vunpack.c.l.b16 %v1082
    %v1411 = vunpack.c.h.b16 %v1082
    %v1412 = vunpack.c.l.b16 %v1083
    %v1413 = vunpack.c.h.b16 %v1083
    %v1414 = vunpack.c.l.b16 %v1084
    %v1415 = vunpack.c.h.b16 %v1084
    %v1416 = vunpack.c.l.b16 %v1085
    %v1417 = vunpack.c.h.b16 %v1085
    %v1418 = vunpack.c.l.b16 %v1086
    %v1419 = vunpack.c.h.b16 %v1086
    %v1420 = vunpack.c.l.b16 %v1087
    %v1421 = vunpack.c.h.b16 %v1087
    %v1422 = vunpack.c.l.b16 %v1088
    %v1423 = vunpack.c.h.b16 %v1088
    %v1424 = vunpack.c.l.b16 %v1089
    %v1425 = vunpack.c.h.b16 %v1089
    %v1426 = vunpack.c.l.b16 %v1090
    %v1427 = vunpack.c.h.b16 %v1090
    %v1428 = vunpack.c.l.b16 %v1091
    %v1429 = vunpack.c.h.b16 %v1091
    %v1430 = vunpack.c.l.b16 %v1092
    %v1431 = vunpack.c.h.b16 %v1092
    %v1432 = vunpack.c.l.b16 %v1093
    %v1433 = vunpack.c.h.b16 %v1093
    %v1434 = vunpack.c.l.b16 %v1094
    %v1435 = vunpack.c.h.b16 %v1094
    %v1436 = vunpack.c.l.b16 %v1095
    %v1437 = vunpack.c.h.b16 %v1095
    %v1438 = vunpack.c.l.b16 %v1096
    %v1439 = vunpack.c.h.b16 %v1096
    %v1440 = vunpack.c.l.b16 %v1097
    %v1441 = vunpack.c.h.b16 %v1097
    %v1442 = vunpack.c.l.b16 %v1098
    %v1443 = vunpack.c.h.b16 %v1098
    %v1444 = vunpack.c.l.b16 %v1099
    %v1445 = vunpack.c.h.b16 %v1099
    %v1446 = vunpack.c.l.b16 %v1100
    %v1447 = vunpack.c.h.b16 %v1100
    %v1448 = vunpack.c.l.b16 %v1101
    %v1449 = vunpack.c.h.b16 %v1101
    %v1450 = vunpack.c.l.b16 %v1102
    %v1451 = vunpack.c.h.b16 %v1102
    %v1452 = vunpack.c.l.b16 %v1103
    %v1453 = vunpack.c.h.b16 %v1103
    %v1454 = vunpack.c.l.b16 %v1104
    %v1455 = vunpack.c.h.b16 %v1104
    %v1456 = vunpack.c.l.b16 %v1105
    %v1457 = vunpack.c.h.b16 %v1105
    %v1458 = vunpack.c.l.b16 %v1106
    %v1459 = vunpack.c.h.b16 %v1106
    %v1460 = vunpack.c.l.b16 %v1107
    %v1461 = vunpack.c.h.b16 %v1107
    %v1462 = vunpack.c.l.b16 %v1108
    %v1463 = vunpack.c.h.b16 %v1108
    %v1464 = vunpack.c.l.b16 %v1109
    %v1465 = vunpack.c.h.b16 %v1109
    %v1466 = vunpack.c.l.b16 %v1110
    %v1467 = vunpack.c.h.b16 %v1110
    %v1468 = vunpack.c.l.b16 %v1111
    %v1469 = vunpack.c.h.b16 %v1111
    %v1470 = vunpack.c.l.b16 %v1112
    %v1471 = vunpack.c.h.b16 %v1112
    %v1472 = vunpack.c.l.b16 %v1113
    %v1473 = vunpack.c.h.b16 %v1113
    %v1474 = vunpack.c.l.b16 %v1114
    %v1475 = vunpack.c.h.b16 %v1114
    %v1476 = vunpack.c.l.b16 %v1115
    %v1477 = vunpack.c.h.b16 %v1115
    %v1478 = vunpack.c.l.b16 %v1116
    %v1479 = vunpack.c.h.b16 %v1116
    %v1480 = vunpack.c.l.b16 %v1117
    %v1481 = vunpack.c.h.b16 %v1117
    %v1482 = vunpack.c.l.b16 %v1118
    %v1483 = vunpack.c.h.b16 %v1118
    %v1484 = vunpack.c.l.b16 %v1119
    %v1485 = vunpack.c.h.b16 %v1119
    %v1486 = vunpack.c.l.b16 %v1120
    %v1487 = vunpack.c.h.b16 %v1120
    %v1488 = vunpack.c.l.b16 %v1121
    %v1489 = vunpack.c.h.b16 %v1121
    %v1490 = vunpack.c.l.b16 %v1122
    %v1491 = vunpack.c.h.b16 %v1122
    %v1492 = vunpack.c.l.b16 %v1123
    %v1493 = vunpack.c.h.b16 %v1123
    %v1494 = vunpack.c.l.b16 %v1124
    %v1495 = vunpack.c.h.b16 %v1124
    %v1496 = vunpack.c.l.b16 %v1125
    %v1497 = vunpack.c.h.b16 %v1125
    %v1498 = vunpack.c.l.b16 %v1126
    %v1499 = vunpack.c.h.b16 %v1126
    %v1500 = vunpack.c.l.b16 %v1127
    %v1501 = vunpack.c.h.b16 %v1127
    %v1502 = vunpack.c.l.b16 %v1128
    %v1503 = vunpack.c.h.b16 %v1128
    %v1504 = vunpack.c.l.b16 %v1129
    %v1505 = vunpack.c.h.b16 %v1129
    %v1506 = vunpack.c.l.b16 %v1130
    %v1507 = vunpack.c.h.b16 %v1130
    %v1508 = vunpack.c.l.b16 %v1131
    %v1509 = vunpack.c.h.b16 %v1131
    %v1510 = vunpack.c.l.b16 %v1132
    %v1511 = vunpack.c.h.b16 %v1132
    %v1512 = vunpack.c.l.b16 %v1133
    %v1513 = vunpack.c.h.b16 %v1133
    %v1514 = vunpack.c.l.b16 %v1134
    %v1515 = vunpack.c.h.b16 %v1134
    %v1516 = vunpack.c.l.b16 %v1135
    %v1517 = vunpack.c.h.b16 %v1135
    %v1518 = vunpack.c.l.b16 %v1136
    %v1519 = vunpack.c.h.b16 %v1136
    %v1520 = vunpack.c.l.b16 %v1137
    %v1521 = vunpack.c.h.b16 %v1137
    %v1522 = vunpack.c.l.b16 %v1138
    %v1523 = vunpack.c.h.b16 %v1138
    %v1524 = vunpack.c.l.b16 %v1139
    %v1525 = vunpack.c.h.b16 %v1139
    %v1526 = vunpack.c.l.b16 %v1140
    %v1527 = vunpack.c.h.b16 %v1140
    %v1528 = vunpack.c.l.b16 %v1141
    %v1529 = vunpack.c.h.b16 %v1141
    %v1530 = vunpack.c.l.b16 %v1142
    %v1531 = vunpack.c.h.b16 %v1142
    %v1532 = vunpack.c.l.b16 %v1143
    %v1533 = vunpack.c.h.b16 %v1143
    %v1534 = vunpack.c.l.b16 %v1144
    %v1535 = vunpack.c.h.b16 %v1144
    %v1536 = vunpack.c.l.b16 %v1145
    %v1537 = vunpack.c.h.b16 %v1145
    %v1538 = vunpack.c.l.b16 %v1146
    %v1539 = vunpack.c.h.b16 %v1146
    %v1540 = vunpack.c.l.b16 %v1147
    %v1541 = vunpack.c.h.b16 %v1147
    %v1542 = vunpack.c.l.b16 %v1148
    %v1543 = vunpack.c.h.b16 %v1148
    %v1544 = vunpack.c.l.b16 %v1149
    %v1545 = vunpack.c.h.b16 %v1149
    %v1546 = vunpack.c.l.b16 %v1150
    %v1547 = vunpack.c.h.b16 %v1150
    %v1548 = vunpack.c.l.b16 %v1151
    %v1549 = vunpack.c.h.b16 %v1151
    %v1550 = vunpack.c.l.b16 %v1152
    %v1551 = vunpack.c.h.b16 %v1152
    %v1552 = vunpack.c.l.b16 %v1153
    %v1553 = vunpack.c.h.b16 %v1153
    %v1554 = vunpack.c.l.b16 %v1154
    %v1555 = vunpack.c.h.b16 %v1154
    %v1556 = vunpack.c.l.b16 %v1155
    %v1557 = vunpack.c.h.b16 %v1155
    %v1558 = vunpack.c.l.b16 %v1156
    %v1559 = vunpack.c.h.b16 %v1156
    %v1560 = vunpack.c.l.b16 %v1157
    %v1561 = vunpack.c.h.b16 %v1157
    %v1562 = vunpack.c.l.b16 %v1158
    %v1563 = vunpack.c.h.b16 %v1158
    %v1564 = vunpack.c.l.b16 %v1159
    %v1565 = vunpack.c.h.b16 %v1159
    %v1566 = vpack.c.b16 %v1314, %v1310
    %v1567 = vpack.c.b16 %v1315, %v1311
    %v1568 = vpack.c.b16 %v1316, %v1312
    %v1569 = vpack.c.b16 %v1317, %v1313
    %v1570 = vpack.c.b16 %v1322, %v1318
    %v1571 = vpack.c.b16 %v1323, %v1319
    %v1572 = vpack.c.b16 %v1324, %v1320
    %v1573 = vpack.c.b16 %v1325, %v1321
    %v1574 = vpack.c.b16 %v1330, %v1326
    %v1575 = vpack.c.b16 %v1331, %v1327
    %v1576 = vpack.c.b16 %v1332, %v1328
    %v1577 = vpack.c.b16 %v1333, %v1329
    %v1578 = vpack.c.b16 %v1338, %v1334
    %v1579 = vpack.c.b16 %v1339, %v1335
    %v1580 = vpack.c.b16 %v1340, %v1336
    %v1581 = vpack.c.b16 %v1341, %v1337
    %v1582 = vpack.c.b16 %v1346, %v1342
    %v1583 = vpack.c.b16 %v1347, %v1343
    %v1584 = vpack.c.b16 %v1348, %v1344
    %v1585 = vpack.c.b16 %v1349, %v1345
    %v1586 = vpack.c.b16 %v1354, %v1350
    %v1587 = vpack.c.b16 %v1355, %v1351
    %v1588 = vpack.c.b16 %v1356, %v1352
    %v1589 = vpack.c.b16 %v1357, %v1353
    %v1590 = vpack.c.b16 %v1362, %v1358
    %v1591 = vpack.c.b16 %v1363, %v1359
    %v1592 = vpack.c.b16 %v1364, %v1360
    %v1593 = vpack.c.b16 %v1365, %v1361
    %v1594 = vpack.c.b16 %v1370, %v1366
    %v1595 = vpack.c.b16 %v1371, %v1367
    %v1596 = vpack.c.b16 %v1372, %v1368
    %v1597 = vpack.c.b16 %v1373, %v1369
    %v1598 = vpack.c.b16 %v1378, %v1374
    %v1599 = vpack.c.b16 %v1379, %v1375
    %v1600 = vpack.c.b16 %v1380, %v1376
    %v1601 = vpack.c.b16 %v1381, %v1377
    %v1602 = vpack.c.b16 %v1386, %v1382
    %v1603 = vpack.c.b16 %v1387, %v1383
    %v1604 = vpack.c.b16 %v1388, %v1384
    %v1605 = vpack.c.b16 %v1389, %v1385
    %v1606 = vpack.c.b16 %v1394, %v1390
    %v1607 = vpack.c.b16 %v1395, %v1391
    %v1608 = vpack.c.b16 %v1396, %v1392
    %v1609 = vpack.c.b16 %v1397, %v1393
    %v1610 = vpack.c.b16 %v1402, %v1398
    %v1611 = vpack.c.b16 %v1403, %v1399
    %v1612 = vpack.c.b16 %v1404, %v1400
    %v1613 = vpack.c.b16 %v1405, %v1401
    %v1614 = vpack.c.b16 %v1410, %v1406
    %v1615 = vpack.c.b16 %v1411, %v1407
    %v1616 = vpack.c.b16 %v1412, %v1408
    %v1617 = vpack.c.b16 %v1413, %v1409
    %v1618 = vpack.c.b16 %v1418, %v1414
    %v1619 = vpack.c.b16 %v1419, %v1415
    %v1620 = vpack.c.b16 %v1420, %v1416
    %v1621 = vpack.c.b16 %v1421, %v1417
    %v1622 = vpack.c.b16 %v1426, %v1422
    %v1623 = vpack.c.b16 %v1427, %v1423
    %v1624 = vpack.c.b16 %v1428, %v1424
    %v1625 = vpack.c.b16 %v1429, %v1425
    %v1626 = vpack.c.b16 %v1434, %v1430
    %v1627 = vpack.c.b16 %v1435, %v1431
    %v1628 = vpack.c.b16 %v1436, %v1432
    %v1629 = vpack.c.b16 %v1437, %v1433
    %v1630 = vpack.c.b16 %v1442, %v1438
    %v1631 = vpack.c.b16 %v1443, %v1439
    %v1632 = vpack.c.b16 %v1444, %v1440
    %v1633 = vpack.c.b16 %v1445, %v1441
    %v1634 = vpack.c.b16 %v1450, %v1446
    %v1635 = vpack.c.b16 %v1451, %v1447
    %v1636 = vpack.c.b16 %v1452, %v1448
    %v1637 = vpack.c.b16 %v1453, %v1449
    %v1638 = vpack.c.b16 %v1458, %v1454
    %v1639 = vpack.c.b16 %v1459, %v1455
    %v1640 = vpack.c.b16 %v1460, %v1456
    %v1641 = vpack.c.b16 %v1461, %v1457
    %v1642 = vpack.c.b16 %v1466, %v1462
    %v1643 = vpack.c.b16 %v1467, %v1463
    %v1644 = vpack.c.b16 %v1468, %v1464
    %v1645 = vpack.c.b16 %v1469, %v1465
    %v1646 = vpack.c.b16 %v1474, %v1470
    %v1647 = vpack.c.b16 %v1475, %v1471
    %v1648 = vpack.c.b16 %v1476, %v1472
    %v1649 = vpack.c.b16 %v1477, %v1473
    %v1650 = vpack.c.b16 %v1482, %v1478
    %v1651 = vpack.c.b16 %v1483, %v1479
    %v1652 = vpack.c.b16 %v1484, %v1480
    %v1653 = vpack.c.b16 %v1485, %v1481
    %v1654 = vpack.c.b16 %v1490, %v1486
    %v1655 = vpack.c.b16 %v1491, %v1487
    %v1656 = vpack.c.b16 %v1492, %v1488
    %v1657 = vpack.c.b16 %v1493, %v1489
    %v1658 = vpack.c.b16 %v1498, %v1494
    %v1659 = vpack.c.b16 %v1499, %v1495
    %v1660 = vpack.c.b16 %v1500, %v1496
    %v1661 = vpack.c.b16 %v1501, %v1497
    %v1662 = vpack.c.b16 %v1506, %v1502
    %v1663 = vpack.c.b16 %v1507, %v1503
    %v1664 = vpack.c.b16 %v1508, %v1504
    %v1665 = vpack.c.b16 %v1509, %v1505
    %v1666 = vpack.c.b16 %v1514, %v1510
    %v1667 = vpack.c.b16 %v1515, %v1511
    %v1668 = vpack.c.b16 %v1516, %v1512
    %v1669 = vpack.c.b16 %v1517, %v1513
    %v1670 = vpack.c.b16 %v1522, %v1518
    %v1671 = vpack.c.b16 %v1523, %v1519
    %v1672 = vpack.c.b16 %v1524, %v1520
    %v1673 = vpack.c.b16 %v1525, %v1521
    %v1674 = vpack.c.b16 %v1530, %v1526
    %v1675 = vpack.c.b16 %v1531, %v1527
    %v1676 = vpack.c.b16 %v1532, %v1528
    %v1677 = vpack.c.b16 %v1533, %v1529
    %v1678 = vpack.c.b16 %v1538, %v1534
    %v1679 = vpack.c.b16 %v1539, %v1535
    %v1680 = vpack.c.b16 %v1540, %v1536
    %v1681 = vpack.c.b16 %v1541, %v1537
    %v1682 = vpack.c.b16 %v1546, %v1542
    %v1683 = vpack.c.b16 %v1547, %v1543
    %v1684 = vpack.c.b16 %v1548, %v1544
    %v1685 = vpack.c.b16 %v1549, %v1545
    %v1686 = vpack.c.b16 %v1554, %v1550
    %v1687 = vpack.c.b16 %v1555, %v1551
    %v1688 = vpack.c.b16 %v1556, %v1552
    %v1689 = vpack.c.b16 %v1557, %v1553
    %v1690 = vpack.c.b16 %v1562, %v1558
    %v1691 = vpack.c.b16 %v1563, %v1559
    %v1692 = vpack.c.b16 %v1564, %v1560
    %v1693 = vpack.c.b16 %v1565, %v1561
    %1822 = vmatprep.subr.bf16.mxu0 %v1567
    %1823 = vmatpush1.bf16.msra.mxu0 %v1566
    %1824 = vmatprep.subr.bf16.mxu0 %v1571
    %1825 = vmatpush1.bf16.msra.mxu0 %v1570
    %1826 = vmatprep.subr.bf16.mxu0 %v1575
    %1827 = vmatpush1.bf16.msra.mxu0 %v1574
    %1828 = vmatprep.subr.bf16.mxu0 %v1579
    %1829 = vmatpush1.bf16.msra.mxu0 %v1578
    %1830 = vmatprep.subr.bf16.mxu0 %v1583
    %1831 = vmatpush1.bf16.msra.mxu0 %v1582
    %1832 = vmatprep.subr.bf16.mxu0 %v1587
    %1833 = vmatpush1.bf16.msra.mxu0 %v1586
    %1834 = vmatprep.subr.bf16.mxu0 %v1591
    %1835 = vmatpush1.bf16.msra.mxu0 %v1590
    %1836 = vmatprep.subr.bf16.mxu0 %v1595
    %1837 = vmatpush1.bf16.msra.mxu0 %v1594
    %1838 = vmatprep.subr.bf16.mxu0 %v1599
    %1839 = vmatpush1.bf16.msra.mxu0 %v1598
    %1840 = vmatprep.subr.bf16.mxu0 %v1603
    %1841 = vmatpush1.bf16.msra.mxu0 %v1602
    %1842 = vmatprep.subr.bf16.mxu0 %v1607
    %1843 = vmatpush1.bf16.msra.mxu0 %v1606
    %1844 = vmatprep.subr.bf16.mxu0 %v1611
    %1845 = vmatpush1.bf16.msra.mxu0 %v1610
    %1846 = vmatprep.subr.bf16.mxu0 %v1615
    %1847 = vmatpush1.bf16.msra.mxu0 %v1614
    %1848 = vmatprep.subr.bf16.mxu0 %v1619
    %1849 = vmatpush1.bf16.msra.mxu0 %v1618
    %1850 = vmatprep.subr.bf16.mxu0 %v1623
    %1851 = vmatpush1.bf16.msra.mxu0 %v1622
    %1852 = vmatprep.subr.bf16.mxu0 %v1627
    %1853 = vmatpush1.bf16.msra.mxu0 %v1626
    %1854 = vmatprep.mubr.bf16.mxu0 %v1029
    %1855 = vmatmul.mubr.bf16.gmra.mrb[0].mxu0 %v1028
    %v1856 = vpop.f32.mrb[0].mxu0
    %v1857 = vadd.f32 %v1165, %v1856
    %v1858 = vpop.f32.mrb[0].mxu0
    %v1859 = vadd.f32 %v1169, %v1858
    %v1860 = vpop.f32.mrb[0].mxu0
    %v1861 = vpop.f32.mrb[0].mxu0
    %1862 = vdwg.mxu0
    %1863 = vmatprep.subr.bf16.mxu0 %v1631
    %1864 = vmatpush1.bf16.msra.mxu0 %v1630
    %1865 = vmatprep.subr.bf16.mxu0 %v1635
    %1866 = vmatpush1.bf16.msra.mxu0 %v1634
    %1867 = vmatprep.subr.bf16.mxu0 %v1639
    %1868 = vmatpush1.bf16.msra.mxu0 %v1638
    %1869 = vmatprep.subr.bf16.mxu0 %v1643
    %1870 = vmatpush1.bf16.msra.mxu0 %v1642
    %1871 = vmatprep.subr.bf16.mxu0 %v1647
    %1872 = vmatpush1.bf16.msra.mxu0 %v1646
    %1873 = vmatprep.subr.bf16.mxu0 %v1651
    %1874 = vmatpush1.bf16.msra.mxu0 %v1650
    %1875 = vmatprep.subr.bf16.mxu0 %v1655
    %1876 = vmatpush1.bf16.msra.mxu0 %v1654
    %1877 = vmatprep.subr.bf16.mxu0 %v1659
    %1878 = vmatpush1.bf16.msra.mxu0 %v1658
    %1879 = vmatprep.subr.bf16.mxu0 %v1663
    %1880 = vmatpush1.bf16.msra.mxu0 %v1662
    %1881 = vmatprep.subr.bf16.mxu0 %v1667
    %1882 = vmatpush1.bf16.msra.mxu0 %v1666
    %1883 = vmatprep.subr.bf16.mxu0 %v1671
    %1884 = vmatpush1.bf16.msra.mxu0 %v1670
    %1885 = vmatprep.subr.bf16.mxu0 %v1675
    %1886 = vmatpush1.bf16.msra.mxu0 %v1674
    %1887 = vmatprep.subr.bf16.mxu0 %v1679
    %1888 = vmatpush1.bf16.msra.mxu0 %v1678
    %1889 = vmatprep.subr.bf16.mxu0 %v1683
    %1890 = vmatpush1.bf16.msra.mxu0 %v1682
    %1891 = vmatprep.subr.bf16.mxu0 %v1687
    %1892 = vmatpush1.bf16.msra.mxu0 %v1686
    %1893 = vmatprep.subr.bf16.mxu0 %v1691
    %1894 = vmatpush1.bf16.msra.mxu0 %v1690
    %1895 = vmatprep.mubr.bf16.mxu0 %v1031
    %1896 = vmatmul.mubr.bf16.gmra.mrb[0].mxu0 %v1030
    %v1897 = vpop.f32.mrb[0].mxu0
    %v1898 = vadd.f32 %v1857, %v1897
    %v1899 = vpop.f32.mrb[0].mxu0
    %v1900 = vadd.f32 %v1859, %v1899
    %v1901 = vpop.f32.mrb[0].mxu0
    %v1902 = vpop.f32.mrb[0].mxu0
    %1903 = vdwg.mxu0
    %1904 = vmatprep.subr.bf16.mxu0 %v1569
    %1905 = vmatpush1.bf16.msra.mxu0 %v1568
    %1906 = vmatprep.subr.bf16.mxu0 %v1573
    %1907 = vmatpush1.bf16.msra.mxu0 %v1572
    %1908 = vmatprep.subr.bf16.mxu0 %v1577
    %1909 = vmatpush1.bf16.msra.mxu0 %v1576
    %1910 = vmatprep.subr.bf16.mxu0 %v1581
    %1911 = vmatpush1.bf16.msra.mxu0 %v1580
    %1912 = vmatprep.subr.bf16.mxu0 %v1585
    %1913 = vmatpush1.bf16.msra.mxu0 %v1584
    %1914 = vmatprep.subr.bf16.mxu0 %v1589
    %1915 = vmatpush1.bf16.msra.mxu0 %v1588
    %1916 = vmatprep.subr.bf16.mxu0 %v1593
    %1917 = vmatpush1.bf16.msra.mxu0 %v1592
    %1918 = vmatprep.subr.bf16.mxu0 %v1597
    %1919 = vmatpush1.bf16.msra.mxu0 %v1596
    %1920 = vmatprep.subr.bf16.mxu0 %v1601
    %1921 = vmatpush1.bf16.msra.mxu0 %v1600
    %1922 = vmatprep.subr.bf16.mxu0 %v1605
    %1923 = vmatpush1.bf16.msra.mxu0 %v1604
    %1924 = vmatprep.subr.bf16.mxu0 %v1609
    %1925 = vmatpush1.bf16.msra.mxu0 %v1608
    %1926 = vmatprep.subr.bf16.mxu0 %v1613
    %1927 = vmatpush1.bf16.msra.mxu0 %v1612
    %1928 = vmatprep.subr.bf16.mxu0 %v1617
    %1929 = vmatpush1.bf16.msra.mxu0 %v1616
    %1930 = vmatprep.subr.bf16.mxu0 %v1621
    %1931 = vmatpush1.bf16.msra.mxu0 %v1620
    %1932 = vmatprep.subr.bf16.mxu0 %v1625
    %1933 = vmatpush1.bf16.msra.mxu0 %v1624
    %1934 = vmatprep.subr.bf16.mxu0 %v1629
    %1935 = vmatpush1.bf16.msra.mxu0 %v1628
    %1936 = vmatprep.mubr.bf16.mxu0 %v1029
    %1937 = vmatmul.mubr.bf16.gmra.mrb[0].mxu0 %v1028
    %v1938 = vpop.f32.mrb[0].mxu0
    %v1939 = vadd.f32 %v1173, %v1938
    %v1940 = vpop.f32.mrb[0].mxu0
    %v1941 = vadd.f32 %v1177, %v1940
    %v1942 = vpop.f32.mrb[0].mxu0
    %v1943 = vpop.f32.mrb[0].mxu0
    %1944 = vdwg.mxu0
    %1945 = vmatprep.subr.bf16.mxu0 %v1633
    %1946 = vmatpush1.bf16.msra.mxu0 %v1632
    %1947 = vmatprep.subr.bf16.mxu0 %v1637
    %1948 = vmatpush1.bf16.msra.mxu0 %v1636
    %1949 = vmatprep.subr.bf16.mxu0 %v1641
    %1950 = vmatpush1.bf16.msra.mxu0 %v1640
    %1951 = vmatprep.subr.bf16.mxu0 %v1645
    %1952 = vmatpush1.bf16.msra.mxu0 %v1644
    %1953 = vmatprep.subr.bf16.mxu0 %v1649
    %1954 = vmatpush1.bf16.msra.mxu0 %v1648
    %1955 = vmatprep.subr.bf16.mxu0 %v1653
    %1956 = vmatpush1.bf16.msra.mxu0 %v1652
    %1957 = vmatprep.subr.bf16.mxu0 %v1657
    %1958 = vmatpush1.bf16.msra.mxu0 %v1656
    %1959 = vmatprep.subr.bf16.mxu0 %v1661
    %1960 = vmatpush1.bf16.msra.mxu0 %v1660
    %1961 = vmatprep.subr.bf16.mxu0 %v1665
    %1962 = vmatpush1.bf16.msra.mxu0 %v1664
    %1963 = vmatprep.subr.bf16.mxu0 %v1669
    %1964 = vmatpush1.bf16.msra.mxu0 %v1668
    %1965 = vmatprep.subr.bf16.mxu0 %v1673
    %1966 = vmatpush1.bf16.msra.mxu0 %v1672
    %1967 = vmatprep.subr.bf16.mxu0 %v1677
    %1968 = vmatpush1.bf16.msra.mxu0 %v1676
    %1969 = vmatprep.subr.bf16.mxu0 %v1681
    %1970 = vmatpush1.bf16.msra.mxu0 %v1680
    %1971 = vmatprep.subr.bf16.mxu0 %v1685
    %1972 = vmatpush1.bf16.msra.mxu0 %v1684
    %1973 = vmatprep.subr.bf16.mxu0 %v1689
    %1974 = vmatpush1.bf16.msra.mxu0 %v1688
    %1975 = vmatprep.subr.bf16.mxu0 %v1693
    %1976 = vmatpush1.bf16.msra.mxu0 %v1692
    %1977 = vmatprep.mubr.bf16.mxu0 %v1031
    %1978 = vmatmul.mubr.bf16.gmra.mrb[0].mxu0 %v1030
    %v1979 = vpop.f32.mrb[0].mxu0
    %v1980 = vadd.f32 %v1939, %v1979
    %v1981 = vpop.f32.mrb[0].mxu0
    %v1982 = vadd.f32 %v1941, %v1981
    %v1983 = vpop.f32.mrb[0].mxu0
    %v1984 = vpop.f32.mrb[0].mxu0
    %1985 = vdwg.mxu0
    %1986 = vst [vmem:[%s6] sm:$0xff] %v1898
    %1987 = vst [vmem:[%s6 + $0x8] sm:$0xff] %v1900
    %1988 = vst [vmem:[%s6 + $0x10] sm:$0xff] %v1980
    %1989 = vst [vmem:[%s6 + $0x18] sm:$0xff] %v1982
    // Predicated region
    $region30: #{res_se_audio_encoder_forward.1} parent=1 // pred_check
      _
    $region31: #{res_se_audio_encoder_forward.1} parent=1 // pred_check_branch
      %1991 = sbr.rel (0) target = $region33
    $region32: #{res_se_audio_encoder_forward.1} parent=1 // pred_region
      _
    $region33: #{res_se_audio_encoder_forward.1} parent=1 // pred_fallthru
      _
    // Predicated region
    $region34: #{res_se_audio_encoder_forward.1} parent=1 // pred_check
      _
    $region35: #{res_se_audio_encoder_forward.1} parent=1 // pred_check_branch
      %1993 = sbr.rel (0) target = $region37
    $region36: #{res_se_audio_encoder_forward.1} parent=1 // pred_region
      _
    $region37: #{res_se_audio_encoder_forward.1} parent=1 // pred_fallthru
      _
    // Predicated region
    $region38: #{res_se_audio_encoder_forward.1} parent=1 // pred_check
      _
    $region39: #{res_se_audio_encoder_forward.1} parent=1 // pred_check_branch
      %1995 = sbr.rel (0) target = $region41
    $region40: #{res_se_audio_encoder_forward.1} parent=1 // pred_region
      _
    $region41: #{res_se_audio_encoder_forward.1} parent=1 // pred_fallthru
      _
    // Predicated region
    $region42: #{res_se_audio_encoder_forward.1} parent=1 // pred_check
      _
    $region43: #{res_se_audio_encoder_forward.1} parent=1 // pred_check_branch
      %1997 = sbr.rel (0) target = $region45
    $region44: #{res_se_audio_encoder_forward.1} parent=1 // pred_region
      _
    $region45: #{res_se_audio_encoder_forward.1} parent=1 // pred_fallthru
      _
    %1998 = vsyncpa [#allocation3], 1
    %1999 = vsyncpa [#allocation5], 1

</llo_original>
